<compile_context>
chip_gen: v6e
topology: v6e:2x2x1
jax: 0.10.0
libtpu: 0.0.40
codegen_flags: <defaults>
</compile_context>

<pallas_src>
import jax
import jax.numpy as jnp
from jax.experimental import pallas as pl
from jax.experimental.pallas import tpu as pltpu


# ---------------------------------------------------------------------------
# Fused kernel: embedding -> LSTM recurrence -> (eval-mode dropout) -> Linear
# Everything is VMEM-resident; grid=() (single invocation, no pipeline steps).
# PyTorch nn.LSTM gate order: i, f, g, o.
# ---------------------------------------------------------------------------
def lstm_lm_kernel(tok_ref, emb_ref, wih_ref, whh_ref, bg_ref,
                   wlin_ref, blin_ref, h0_ref, c0_ref, out_ref):
    BT = tok_ref.shape[0]            # T * B (time-major rows)
    V, _E = emb_ref.shape
    B, H = h0_ref.shape
    T = BT // B

    # ---- 1. embedding lookup as one-hot @ table (MXU), fully in-kernel -----
    tok = tok_ref[...]                                              # (T*B, 1) i32
    vocab_iota = jax.lax.broadcasted_iota(jnp.int32, (BT, V), 1)
    onehot = (vocab_iota == tok).astype(jnp.float32)                # (T*B, V)
    x = jnp.dot(onehot, emb_ref[...],
                preferred_element_type=jnp.float32)                 # (T*B, E)

    # ---- 2. input projection + folded bias, hoisted off the serial path ----
    gates_x = (jnp.dot(x, wih_ref[...], preferred_element_type=jnp.float32)
               + bg_ref[...])                                       # (T*B, 4H)

    w_hh = whh_ref[...]                                             # (H, 4H)
    h = h0_ref[...]                                                 # (B, H)
    c = c0_ref[...]                                                 # (B, H)

    # ---- 3. recurrence, fully unrolled over the small static T -------------
    hs = []
    for t in range(T):
        gx_t = gates_x[t * B:(t + 1) * B, :]                        # contiguous rows
        gates = gx_t + jnp.dot(h, w_hh, preferred_element_type=jnp.float32)
        # H == 128 -> each gate slice is an aligned full 128-lane tile.
        i = jax.nn.sigmoid(gates[:, 0:H])
        f = jax.nn.sigmoid(gates[:, H:2 * H])
        g = jnp.tanh(gates[:, 2 * H:3 * H])
        o = jax.nn.sigmoid(gates[:, 3 * H:4 * H])
        c = f * c + i * g
        h = o * jnp.tanh(c)
        hs.append(h)

    # ---- 4. batch-major restack + fused output projection ------------------
    # row b*T + t of h_slab == h_t of batch b  (PyTorch batch_first reshape).
    h_slab = jnp.stack(hs, axis=1).reshape(BT, H)                   # (B*T, H)
    # TODO(synk): nn.Dropout is identity in eval mode; training-mode random
    # masking is intentionally not reproduced here.
    out_ref[...] = (jnp.dot(h_slab, wlin_ref[...],
                            preferred_element_type=jnp.float32)
                    + blin_ref[...])                                # (B*T, V)


def lstm_lm_forward(tokens, params, h0, c0):
    B, T = tokens.shape
    V = params["emb"].shape[0]
    # Time-major flattened token ids (row t*B + b): per-step slices inside the
    # kernel are contiguous, and the kernel writes the logits back batch-major,
    # so no activation transpose ever touches HBM.
    tok_tm = tokens.T.reshape(B * T, 1).astype(jnp.int32)

    in_specs = [pl.BlockSpec(memory_space=pltpu.MemorySpace.VMEM)
                for _ in range(9)]
    out_specs = pl.BlockSpec(memory_space=pltpu.MemorySpace.VMEM)

    return pl.pallas_call(
        lstm_lm_kernel,
        out_shape=jax.ShapeDtypeStruct((B * T, V), jnp.float32),
        in_specs=in_specs,
        out_specs=out_specs,
    )(tok_tm, params["emb"], params["w_ih_t"], params["w_hh_t"],
      params["b_gates"], params["w_lin_t"], params["b_lin"], h0, c0)


# ---------------------------------------------------------------------------
# Pure-JAX reference (for correctness check only).
# ---------------------------------------------------------------------------
def lstm_lm_reference(tokens, params, h0, c0):
    H = h0.shape[1]
    x = jnp.take(params["emb"], tokens, axis=0)                     # (B, T, E)

    def step(carry, x_t):
        h, c = carry
        gates = (x_t @ params["w_ih_t"] + h @ params["w_hh_t"]
                 + params["b_gates"])
        i = jax.nn.sigmoid(gates[:, 0:H])
        f = jax.nn.sigmoid(gates[:, H:2 * H])
        g = jnp.tanh(gates[:, 2 * H:3 * H])
        o = jax.nn.sigmoid(gates[:, 3 * H:4 * H])
        c = f * c + i * g
        h = o * jnp.tanh(c)
        return (h, c), h

    xs = jnp.transpose(x, (1, 0, 2))                                # (T, B, E)
    _, hs = jax.lax.scan(step, (h0, c0), xs)                        # (T, B, H)
    h_slab = jnp.transpose(hs, (1, 0, 2)).reshape(-1, H)            # (B*T, H)
    return h_slab @ params["w_lin_t"] + params["b_lin"]             # (B*T, V)


if __name__ == "__main__":
    # Small shapes consistent with the module's forward.
    VOCAB = 50
    EMB = 32       # embedding_dim (small)
    HID = 128      # hidden_dim (module default; keeps gate slices lane-aligned)
    B = 2          # batch_size
    T = 8          # sequence length

    key = jax.random.PRNGKey(0)
    keys = jax.random.split(key, 10)

    emb_table = jax.random.normal(keys[0], (VOCAB, EMB), jnp.float32) * 0.1
    w_ih = jax.random.normal(keys[1], (4 * HID, EMB), jnp.float32) * 0.1
    w_hh = jax.random.normal(keys[2], (4 * HID, HID), jnp.float32) * 0.1
    b_ih = jax.random.normal(keys[3], (4 * HID,), jnp.float32) * 0.1
    b_hh = jax.random.normal(keys[4], (4 * HID,), jnp.float32) * 0.1
    w_lin = jax.random.normal(keys[5], (VOCAB, HID), jnp.float32) * 0.1
    b_lin = jax.random.normal(keys[6], (VOCAB,), jnp.float32) * 0.1

    params = {
        "emb": emb_table,                                # (V, E)
        "w_ih_t": w_ih.T,                                # (E, 4H)
        "w_hh_t": w_hh.T,                                # (H, 4H)
        "b_gates": (b_ih + b_hh).reshape(1, 4 * HID),    # (1, 4H)
        "w_lin_t": w_lin.T,                              # (H, V)
        "b_lin": b_lin.reshape(1, VOCAB),                # (1, V)
    }

    # init_hidden(): torch.randn(1, B, H) for h0 and c0 (deterministic here).
    h0 = jax.random.normal(keys[7], (B, HID), jnp.float32)
    c0 = jax.random.normal(keys[8], (B, HID), jnp.float32)

    tokens = jax.random.randint(keys[9], (B, T), 0, VOCAB, dtype=jnp.int32)

    out = lstm_lm_forward(tokens, params, h0, c0)
    jax.block_until_ready(out)
    assert out.shape == (B * T, VOCAB), out.shape

    ref = lstm_lm_reference(tokens, params, h0, c0)
    max_err = float(jnp.max(jnp.abs(out - ref)))
    assert jnp.allclose(out, ref, atol=2e-3, rtol=2e-3), max_err

    print("KERNEL_OK")
</pallas_src>

<mosaic_0001>
module attributes {stable_mosaic.version = 11 : i64} {
  func.func @lstm_lm_kernel(%arg0: memref<16x1xi32, #tpu.memory_space<vmem>>, %arg1: memref<50x32xf32, #tpu.memory_space<vmem>>, %arg2: memref<32x512xf32, #tpu.memory_space<vmem>>, %arg3: memref<128x512xf32, #tpu.memory_space<vmem>>, %arg4: memref<1x512xf32, #tpu.memory_space<vmem>>, %arg5: memref<128x50xf32, #tpu.memory_space<vmem>>, %arg6: memref<1x50xf32, #tpu.memory_space<vmem>>, %arg7: memref<2x128xf32, #tpu.memory_space<vmem>>, %arg8: memref<2x128xf32, #tpu.memory_space<vmem>>, %arg9: memref<16x50xf32, #tpu.memory_space<vmem>>) attributes {dimension_semantics = [], scalar_prefetch = 0 : i64, scratch_operands = 0 : i64, tpu.core_type = #tpu.core_type<tc>} {
    %c0 = arith.constant 0 : index
    %c0_0 = arith.constant 0 : index
    %0 = vector.load %arg0[%c0, %c0_0] : memref<16x1xi32, #tpu.memory_space<vmem>>, vector<16x1xi32>
    %1 = tpu.iota {dimensions = array<i32: 1>} : vector<16x50xi32>
    %2 = vector.broadcast %0 : vector<16x1xi32> to vector<16x50xi32>
    %3 = arith.cmpi eq, %1, %2 : vector<16x50xi32>
    %4 = arith.extui %3 : vector<16x50xi1> to vector<16x50xi32>
    %5 = arith.sitofp %4 : vector<16x50xi32> to vector<16x50xf32>
    %c0_1 = arith.constant 0 : index
    %c0_2 = arith.constant 0 : index
    %6 = vector.load %arg1[%c0_1, %c0_2] : memref<50x32xf32, #tpu.memory_space<vmem>>, vector<50x32xf32>
    %cst = arith.constant dense<0.000000e+00> : vector<16x32xf32>
    %7 = tpu.matmul %5, %6, %cst {dimension_numbers = #tpu.dot_dimension_numbers<[1], [0], [0], [1], [0, 0, 1, 1], [], []>} : vector<16x50xf32>, vector<50x32xf32>, vector<16x32xf32> -> vector<16x32xf32>
    %c0_3 = arith.constant 0 : index
    %c0_4 = arith.constant 0 : index
    %8 = vector.load %arg2[%c0_3, %c0_4] : memref<32x512xf32, #tpu.memory_space<vmem>>, vector<32x512xf32>
    %cst_5 = arith.constant dense<0.000000e+00> : vector<16x512xf32>
    %9 = tpu.matmul %7, %8, %cst_5 {dimension_numbers = #tpu.dot_dimension_numbers<[1], [0], [0], [1], [0, 0, 1, 1], [], []>} : vector<16x32xf32>, vector<32x512xf32>, vector<16x512xf32> -> vector<16x512xf32>
    %c0_6 = arith.constant 0 : index
    %c0_7 = arith.constant 0 : index
    %10 = vector.load %arg4[%c0_6, %c0_7] : memref<1x512xf32, #tpu.memory_space<vmem>>, vector<1x512xf32>
    %11 = vector.broadcast %10 : vector<1x512xf32> to vector<16x512xf32>
    %12 = arith.addf %9, %11 : vector<16x512xf32>
    %c0_8 = arith.constant 0 : index
    %c0_9 = arith.constant 0 : index
    %13 = vector.load %arg3[%c0_8, %c0_9] : memref<128x512xf32, #tpu.memory_space<vmem>>, vector<128x512xf32>
    %c0_10 = arith.constant 0 : index
    %c0_11 = arith.constant 0 : index
    %14 = vector.load %arg7[%c0_10, %c0_11] : memref<2x128xf32, #tpu.memory_space<vmem>>, vector<2x128xf32>
    %c0_12 = arith.constant 0 : index
    %c0_13 = arith.constant 0 : index
    %15 = vector.load %arg8[%c0_12, %c0_13] : memref<2x128xf32, #tpu.memory_space<vmem>>, vector<2x128xf32>
    %16 = vector.extract_strided_slice %12 {offsets = [0, 0], sizes = [2, 512], strides = [1, 1]} : vector<16x512xf32> to vector<2x512xf32>
    %cst_14 = arith.constant dense<0.000000e+00> : vector<2x512xf32>
    %17 = tpu.matmul %14, %13, %cst_14 {dimension_numbers = #tpu.dot_dimension_numbers<[1], [0], [0], [1], [0, 0, 1, 1], [], []>} : vector<2x128xf32>, vector<128x512xf32>, vector<2x512xf32> -> vector<2x512xf32>
    %18 = arith.addf %16, %17 : vector<2x512xf32>
    %19 = vector.extract_strided_slice %18 {offsets = [0, 0], sizes = [2, 128], strides = [1, 1]} : vector<2x512xf32> to vector<2x128xf32>
    %20 = arith.negf %19 : vector<2x128xf32>
    %21 = math.exp %20 : vector<2x128xf32>
    %cst_15 = arith.constant 1.000000e+00 : f32
    %22 = vector.broadcast %cst_15 : f32 to vector<2x128xf32>
    %23 = arith.addf %22, %21 : vector<2x128xf32>
    %24 = arith.divf %22, %23 : vector<2x128xf32>
    %25 = vector.extract_strided_slice %18 {offsets = [0, 128], sizes = [2, 128], strides = [1, 1]} : vector<2x512xf32> to vector<2x128xf32>
    %26 = arith.negf %25 : vector<2x128xf32>
    %27 = math.exp %26 : vector<2x128xf32>
    %cst_16 = arith.constant 1.000000e+00 : f32
    %28 = vector.broadcast %cst_16 : f32 to vector<2x128xf32>
    %29 = arith.addf %28, %27 : vector<2x128xf32>
    %30 = arith.divf %28, %29 : vector<2x128xf32>
    %31 = vector.extract_strided_slice %18 {offsets = [0, 256], sizes = [2, 128], strides = [1, 1]} : vector<2x512xf32> to vector<2x128xf32>
    %32 = math.tanh %31 : vector<2x128xf32>
    %33 = vector.extract_strided_slice %18 {offsets = [0, 384], sizes = [2, 128], strides = [1, 1]} : vector<2x512xf32> to vector<2x128xf32>
    %34 = arith.negf %33 : vector<2x128xf32>
    %35 = math.exp %34 : vector<2x128xf32>
    %cst_17 = arith.constant 1.000000e+00 : f32
    %36 = vector.broadcast %cst_17 : f32 to vector<2x128xf32>
    %37 = arith.addf %36, %35 : vector<2x128xf32>
    %38 = arith.divf %36, %37 : vector<2x128xf32>
    %39 = arith.mulf %30, %15 : vector<2x128xf32>
    %40 = arith.mulf %24, %32 : vector<2x128xf32>
    %41 = arith.addf %39, %40 : vector<2x128xf32>
    %42 = math.tanh %41 : vector<2x128xf32>
    %43 = arith.mulf %38, %42 : vector<2x128xf32>
    %44 = vector.extract_strided_slice %12 {offsets = [2, 0], sizes = [2, 512], strides = [1, 1]} : vector<16x512xf32> to vector<2x512xf32>
    %cst_18 = arith.constant dense<0.000000e+00> : vector<2x512xf32>
    %45 = tpu.matmul %43, %13, %cst_18 {dimension_numbers = #tpu.dot_dimension_numbers<[1], [0], [0], [1], [0, 0, 1, 1], [], []>} : vector<2x128xf32>, vector<128x512xf32>, vector<2x512xf32> -> vector<2x512xf32>
    %46 = arith.addf %44, %45 : vector<2x512xf32>
    %47 = vector.extract_strided_slice %46 {offsets = [0, 0], sizes = [2, 128], strides = [1, 1]} : vector<2x512xf32> to vector<2x128xf32>
    %48 = arith.negf %47 : vector<2x128xf32>
    %49 = math.exp %48 : vector<2x128xf32>
    %cst_19 = arith.constant 1.000000e+00 : f32
    %50 = vector.broadcast %cst_19 : f32 to vector<2x128xf32>
    %51 = arith.addf %50, %49 : vector<2x128xf32>
    %52 = arith.divf %50, %51 : vector<2x128xf32>
    %53 = vector.extract_strided_slice %46 {offsets = [0, 128], sizes = [2, 128], strides = [1, 1]} : vector<2x512xf32> to vector<2x128xf32>
    %54 = arith.negf %53 : vector<2x128xf32>
    %55 = math.exp %54 : vector<2x128xf32>
    %cst_20 = arith.constant 1.000000e+00 : f32
    %56 = vector.broadcast %cst_20 : f32 to vector<2x128xf32>
    %57 = arith.addf %56, %55 : vector<2x128xf32>
    %58 = arith.divf %56, %57 : vector<2x128xf32>
    %59 = vector.extract_strided_slice %46 {offsets = [0, 256], sizes = [2, 128], strides = [1, 1]} : vector<2x512xf32> to vector<2x128xf32>
    %60 = math.tanh %59 : vector<2x128xf32>
    %61 = vector.extract_strided_slice %46 {offsets = [0, 384], sizes = [2, 128], strides = [1, 1]} : vector<2x512xf32> to vector<2x128xf32>
    %62 = arith.negf %61 : vector<2x128xf32>
    %63 = math.exp %62 : vector<2x128xf32>
    %cst_21 = arith.constant 1.000000e+00 : f32
    %64 = vector.broadcast %cst_21 : f32 to vector<2x128xf32>
    %65 = arith.addf %64, %63 : vector<2x128xf32>
    %66 = arith.divf %64, %65 : vector<2x128xf32>
    %67 = arith.mulf %58, %41 : vector<2x128xf32>
    %68 = arith.mulf %52, %60 : vector<2x128xf32>
    %69 = arith.addf %67, %68 : vector<2x128xf32>
    %70 = math.tanh %69 : vector<2x128xf32>
    %71 = arith.mulf %66, %70 : vector<2x128xf32>
    %72 = vector.extract_strided_slice %12 {offsets = [4, 0], sizes = [2, 512], strides = [1, 1]} : vector<16x512xf32> to vector<2x512xf32>
    %cst_22 = arith.constant dense<0.000000e+00> : vector<2x512xf32>
    %73 = tpu.matmul %71, %13, %cst_22 {dimension_numbers = #tpu.dot_dimension_numbers<[1], [0], [0], [1], [0, 0, 1, 1], [], []>} : vector<2x128xf32>, vector<128x512xf32>, vector<2x512xf32> -> vector<2x512xf32>
    %74 = arith.addf %72, %73 : vector<2x512xf32>
    %75 = vector.extract_strided_slice %74 {offsets = [0, 0], sizes = [2, 128], strides = [1, 1]} : vector<2x512xf32> to vector<2x128xf32>
    %76 = arith.negf %75 : vector<2x128xf32>
    %77 = math.exp %76 : vector<2x128xf32>
    %cst_23 = arith.constant 1.000000e+00 : f32
    %78 = vector.broadcast %cst_23 : f32 to vector<2x128xf32>
    %79 = arith.addf %78, %77 : vector<2x128xf32>
    %80 = arith.divf %78, %79 : vector<2x128xf32>
    %81 = vector.extract_strided_slice %74 {offsets = [0, 128], sizes = [2, 128], strides = [1, 1]} : vector<2x512xf32> to vector<2x128xf32>
    %82 = arith.negf %81 : vector<2x128xf32>
    %83 = math.exp %82 : vector<2x128xf32>
    %cst_24 = arith.constant 1.000000e+00 : f32
    %84 = vector.broadcast %cst_24 : f32 to vector<2x128xf32>
    %85 = arith.addf %84, %83 : vector<2x128xf32>
    %86 = arith.divf %84, %85 : vector<2x128xf32>
    %87 = vector.extract_strided_slice %74 {offsets = [0, 256], sizes = [2, 128], strides = [1, 1]} : vector<2x512xf32> to vector<2x128xf32>
    %88 = math.tanh %87 : vector<2x128xf32>
    %89 = vector.extract_strided_slice %74 {offsets = [0, 384], sizes = [2, 128], strides = [1, 1]} : vector<2x512xf32> to vector<2x128xf32>
    %90 = arith.negf %89 : vector<2x128xf32>
    %91 = math.exp %90 : vector<2x128xf32>
    %cst_25 = arith.constant 1.000000e+00 : f32
    %92 = vector.broadcast %cst_25 : f32 to vector<2x128xf32>
    %93 = arith.addf %92, %91 : vector<2x128xf32>
    %94 = arith.divf %92, %93 : vector<2x128xf32>
    %95 = arith.mulf %86, %69 : vector<2x128xf32>
    %96 = arith.mulf %80, %88 : vector<2x128xf32>
    %97 = arith.addf %95, %96 : vector<2x128xf32>
    %98 = math.tanh %97 : vector<2x128xf32>
    %99 = arith.mulf %94, %98 : vector<2x128xf32>
    %100 = vector.extract_strided_slice %12 {offsets = [6, 0], sizes = [2, 512], strides = [1, 1]} : vector<16x512xf32> to vector<2x512xf32>
    %cst_26 = arith.constant dense<0.000000e+00> : vector<2x512xf32>
    %101 = tpu.matmul %99, %13, %cst_26 {dimension_numbers = #tpu.dot_dimension_numbers<[1], [0], [0], [1], [0, 0, 1, 1], [], []>} : vector<2x128xf32>, vector<128x512xf32>, vector<2x512xf32> -> vector<2x512xf32>
    %102 = arith.addf %100, %101 : vector<2x512xf32>
    %103 = vector.extract_strided_slice %102 {offsets = [0, 0], sizes = [2, 128], strides = [1, 1]} : vector<2x512xf32> to vector<2x128xf32>
    %104 = arith.negf %103 : vector<2x128xf32>
    %105 = math.exp %104 : vector<2x128xf32>
    %cst_27 = arith.constant 1.000000e+00 : f32
    %106 = vector.broadcast %cst_27 : f32 to vector<2x128xf32>
    %107 = arith.addf %106, %105 : vector<2x128xf32>
    %108 = arith.divf %106, %107 : vector<2x128xf32>
    %109 = vector.extract_strided_slice %102 {offsets = [0, 128], sizes = [2, 128], strides = [1, 1]} : vector<2x512xf32> to vector<2x128xf32>
    %110 = arith.negf %109 : vector<2x128xf32>
    %111 = math.exp %110 : vector<2x128xf32>
    %cst_28 = arith.constant 1.000000e+00 : f32
    %112 = vector.broadcast %cst_28 : f32 to vector<2x128xf32>
    %113 = arith.addf %112, %111 : vector<2x128xf32>
    %114 = arith.divf %112, %113 : vector<2x128xf32>
    %115 = vector.extract_strided_slice %102 {offsets = [0, 256], sizes = [2, 128], strides = [1, 1]} : vector<2x512xf32> to vector<2x128xf32>
    %116 = math.tanh %115 : vector<2x128xf32>
    %117 = vector.extract_strided_slice %102 {offsets = [0, 384], sizes = [2, 128], strides = [1, 1]} : vector<2x512xf32> to vector<2x128xf32>
    %118 = arith.negf %117 : vector<2x128xf32>
    %119 = math.exp %118 : vector<2x128xf32>
    %cst_29 = arith.constant 1.000000e+00 : f32
    %120 = vector.broadcast %cst_29 : f32 to vector<2x128xf32>
    %121 = arith.addf %120, %119 : vector<2x128xf32>
    %122 = arith.divf %120, %121 : vector<2x128xf32>
    %123 = arith.mulf %114, %97 : vector<2x128xf32>
    %124 = arith.mulf %108, %116 : vector<2x128xf32>
    %125 = arith.addf %123, %124 : vector<2x128xf32>
    %126 = math.tanh %125 : vector<2x128xf32>
    %127 = arith.mulf %122, %126 : vector<2x128xf32>
    %128 = vector.extract_strided_slice %12 {offsets = [8, 0], sizes = [2, 512], strides = [1, 1]} : vector<16x512xf32> to vector<2x512xf32>
    %cst_30 = arith.constant dense<0.000000e+00> : vector<2x512xf32>
    %129 = tpu.matmul %127, %13, %cst_30 {dimension_numbers = #tpu.dot_dimension_numbers<[1], [0], [0], [1], [0, 0, 1, 1], [], []>} : vector<2x128xf32>, vector<128x512xf32>, vector<2x512xf32> -> vector<2x512xf32>
    %130 = arith.addf %128, %129 : vector<2x512xf32>
    %131 = vector.extract_strided_slice %130 {offsets = [0, 0], sizes = [2, 128], strides = [1, 1]} : vector<2x512xf32> to vector<2x128xf32>
    %132 = arith.negf %131 : vector<2x128xf32>
    %133 = math.exp %132 : vector<2x128xf32>
    %cst_31 = arith.constant 1.000000e+00 : f32
    %134 = vector.broadcast %cst_31 : f32 to vector<2x128xf32>
    %135 = arith.addf %134, %133 : vector<2x128xf32>
    %136 = arith.divf %134, %135 : vector<2x128xf32>
    %137 = vector.extract_strided_slice %130 {offsets = [0, 128], sizes = [2, 128], strides = [1, 1]} : vector<2x512xf32> to vector<2x128xf32>
    %138 = arith.negf %137 : vector<2x128xf32>
    %139 = math.exp %138 : vector<2x128xf32>
    %cst_32 = arith.constant 1.000000e+00 : f32
    %140 = vector.broadcast %cst_32 : f32 to vector<2x128xf32>
    %141 = arith.addf %140, %139 : vector<2x128xf32>
    %142 = arith.divf %140, %141 : vector<2x128xf32>
    %143 = vector.extract_strided_slice %130 {offsets = [0, 256], sizes = [2, 128], strides = [1, 1]} : vector<2x512xf32> to vector<2x128xf32>
    %144 = math.tanh %143 : vector<2x128xf32>
    %145 = vector.extract_strided_slice %130 {offsets = [0, 384], sizes = [2, 128], strides = [1, 1]} : vector<2x512xf32> to vector<2x128xf32>
    %146 = arith.negf %145 : vector<2x128xf32>
    %147 = math.exp %146 : vector<2x128xf32>
    %cst_33 = arith.constant 1.000000e+00 : f32
    %148 = vector.broadcast %cst_33 : f32 to vector<2x128xf32>
    %149 = arith.addf %148, %147 : vector<2x128xf32>
    %150 = arith.divf %148, %149 : vector<2x128xf32>
    %151 = arith.mulf %142, %125 : vector<2x128xf32>
    %152 = arith.mulf %136, %144 : vector<2x128xf32>
    %153 = arith.addf %151, %152 : vector<2x128xf32>
    %154 = math.tanh %153 : vector<2x128xf32>
    %155 = arith.mulf %150, %154 : vector<2x128xf32>
    %156 = vector.extract_strided_slice %12 {offsets = [10, 0], sizes = [2, 512], strides = [1, 1]} : vector<16x512xf32> to vector<2x512xf32>
    %cst_34 = arith.constant dense<0.000000e+00> : vector<2x512xf32>
    %157 = tpu.matmul %155, %13, %cst_34 {dimension_numbers = #tpu.dot_dimension_numbers<[1], [0], [0], [1], [0, 0, 1, 1], [], []>} : vector<2x128xf32>, vector<128x512xf32>, vector<2x512xf32> -> vector<2x512xf32>
    %158 = arith.addf %156, %157 : vector<2x512xf32>
    %159 = vector.extract_strided_slice %158 {offsets = [0, 0], sizes = [2, 128], strides = [1, 1]} : vector<2x512xf32> to vector<2x128xf32>
    %160 = arith.negf %159 : vector<2x128xf32>
    %161 = math.exp %160 : vector<2x128xf32>
    %cst_35 = arith.constant 1.000000e+00 : f32
    %162 = vector.broadcast %cst_35 : f32 to vector<2x128xf32>
    %163 = arith.addf %162, %161 : vector<2x128xf32>
    %164 = arith.divf %162, %163 : vector<2x128xf32>
    %165 = vector.extract_strided_slice %158 {offsets = [0, 128], sizes = [2, 128], strides = [1, 1]} : vector<2x512xf32> to vector<2x128xf32>
    %166 = arith.negf %165 : vector<2x128xf32>
    %167 = math.exp %166 : vector<2x128xf32>
    %cst_36 = arith.constant 1.000000e+00 : f32
    %168 = vector.broadcast %cst_36 : f32 to vector<2x128xf32>
    %169 = arith.addf %168, %167 : vector<2x128xf32>
    %170 = arith.divf %168, %169 : vector<2x128xf32>
    %171 = vector.extract_strided_slice %158 {offsets = [0, 256], sizes = [2, 128], strides = [1, 1]} : vector<2x512xf32> to vector<2x128xf32>
    %172 = math.tanh %171 : vector<2x128xf32>
    %173 = vector.extract_strided_slice %158 {offsets = [0, 384], sizes = [2, 128], strides = [1, 1]} : vector<2x512xf32> to vector<2x128xf32>
    %174 = arith.negf %173 : vector<2x128xf32>
    %175 = math.exp %174 : vector<2x128xf32>
    %cst_37 = arith.constant 1.000000e+00 : f32
    %176 = vector.broadcast %cst_37 : f32 to vector<2x128xf32>
    %177 = arith.addf %176, %175 : vector<2x128xf32>
    %178 = arith.divf %176, %177 : vector<2x128xf32>
    %179 = arith.mulf %170, %153 : vector<2x128xf32>
    %180 = arith.mulf %164, %172 : vector<2x128xf32>
    %181 = arith.addf %179, %180 : vector<2x128xf32>
    %182 = math.tanh %181 : vector<2x128xf32>
    %183 = arith.mulf %178, %182 : vector<2x128xf32>
    %184 = vector.extract_strided_slice %12 {offsets = [12, 0], sizes = [2, 512], strides = [1, 1]} : vector<16x512xf32> to vector<2x512xf32>
    %cst_38 = arith.constant dense<0.000000e+00> : vector<2x512xf32>
    %185 = tpu.matmul %183, %13, %cst_38 {dimension_numbers = #tpu.dot_dimension_numbers<[1], [0], [0], [1], [0, 0, 1, 1], [], []>} : vector<2x128xf32>, vector<128x512xf32>, vector<2x512xf32> -> vector<2x512xf32>
    %186 = arith.addf %184, %185 : vector<2x512xf32>
    %187 = vector.extract_strided_slice %186 {offsets = [0, 0], sizes = [2, 128], strides = [1, 1]} : vector<2x512xf32> to vector<2x128xf32>
    %188 = arith.negf %187 : vector<2x128xf32>
    %189 = math.exp %188 : vector<2x128xf32>
    %cst_39 = arith.constant 1.000000e+00 : f32
    %190 = vector.broadcast %cst_39 : f32 to vector<2x128xf32>
    %191 = arith.addf %190, %189 : vector<2x128xf32>
    %192 = arith.divf %190, %191 : vector<2x128xf32>
    %193 = vector.extract_strided_slice %186 {offsets = [0, 128], sizes = [2, 128], strides = [1, 1]} : vector<2x512xf32> to vector<2x128xf32>
    %194 = arith.negf %193 : vector<2x128xf32>
    %195 = math.exp %194 : vector<2x128xf32>
    %cst_40 = arith.constant 1.000000e+00 : f32
    %196 = vector.broadcast %cst_40 : f32 to vector<2x128xf32>
    %197 = arith.addf %196, %195 : vector<2x128xf32>
    %198 = arith.divf %196, %197 : vector<2x128xf32>
    %199 = vector.extract_strided_slice %186 {offsets = [0, 256], sizes = [2, 128], strides = [1, 1]} : vector<2x512xf32> to vector<2x128xf32>
    %200 = math.tanh %199 : vector<2x128xf32>
    %201 = vector.extract_strided_slice %186 {offsets = [0, 384], sizes = [2, 128], strides = [1, 1]} : vector<2x512xf32> to vector<2x128xf32>
    %202 = arith.negf %201 : vector<2x128xf32>
    %203 = math.exp %202 : vector<2x128xf32>
    %cst_41 = arith.constant 1.000000e+00 : f32
    %204 = vector.broadcast %cst_41 : f32 to vector<2x128xf32>
    %205 = arith.addf %204, %203 : vector<2x128xf32>
    %206 = arith.divf %204, %205 : vector<2x128xf32>
    %207 = arith.mulf %198, %181 : vector<2x128xf32>
    %208 = arith.mulf %192, %200 : vector<2x128xf32>
    %209 = arith.addf %207, %208 : vector<2x128xf32>
    %210 = math.tanh %209 : vector<2x128xf32>
    %211 = arith.mulf %206, %210 : vector<2x128xf32>
    %212 = vector.extract_strided_slice %12 {offsets = [14, 0], sizes = [2, 512], strides = [1, 1]} : vector<16x512xf32> to vector<2x512xf32>
    %cst_42 = arith.constant dense<0.000000e+00> : vector<2x512xf32>
    %213 = tpu.matmul %211, %13, %cst_42 {dimension_numbers = #tpu.dot_dimension_numbers<[1], [0], [0], [1], [0, 0, 1, 1], [], []>} : vector<2x128xf32>, vector<128x512xf32>, vector<2x512xf32> -> vector<2x512xf32>
    %214 = arith.addf %212, %213 : vector<2x512xf32>
    %215 = vector.extract_strided_slice %214 {offsets = [0, 0], sizes = [2, 128], strides = [1, 1]} : vector<2x512xf32> to vector<2x128xf32>
    %216 = arith.negf %215 : vector<2x128xf32>
    %217 = math.exp %216 : vector<2x128xf32>
    %cst_43 = arith.constant 1.000000e+00 : f32
    %218 = vector.broadcast %cst_43 : f32 to vector<2x128xf32>
    %219 = arith.addf %218, %217 : vector<2x128xf32>
    %220 = arith.divf %218, %219 : vector<2x128xf32>
    %221 = vector.extract_strided_slice %214 {offsets = [0, 128], sizes = [2, 128], strides = [1, 1]} : vector<2x512xf32> to vector<2x128xf32>
    %222 = arith.negf %221 : vector<2x128xf32>
    %223 = math.exp %222 : vector<2x128xf32>
    %cst_44 = arith.constant 1.000000e+00 : f32
    %224 = vector.broadcast %cst_44 : f32 to vector<2x128xf32>
    %225 = arith.addf %224, %223 : vector<2x128xf32>
    %226 = arith.divf %224, %225 : vector<2x128xf32>
    %227 = vector.extract_strided_slice %214 {offsets = [0, 256], sizes = [2, 128], strides = [1, 1]} : vector<2x512xf32> to vector<2x128xf32>
    %228 = math.tanh %227 : vector<2x128xf32>
    %229 = vector.extract_strided_slice %214 {offsets = [0, 384], sizes = [2, 128], strides = [1, 1]} : vector<2x512xf32> to vector<2x128xf32>
    %230 = arith.negf %229 : vector<2x128xf32>
    %231 = math.exp %230 : vector<2x128xf32>
    %cst_45 = arith.constant 1.000000e+00 : f32
    %232 = vector.broadcast %cst_45 : f32 to vector<2x128xf32>
    %233 = arith.addf %232, %231 : vector<2x128xf32>
    %234 = arith.divf %232, %233 : vector<2x128xf32>
    %235 = arith.mulf %226, %209 : vector<2x128xf32>
    %236 = arith.mulf %220, %228 : vector<2x128xf32>
    %237 = arith.addf %235, %236 : vector<2x128xf32>
    %238 = math.tanh %237 : vector<2x128xf32>
    %239 = arith.mulf %234, %238 : vector<2x128xf32>
    %240 = vector.shape_cast %43 : vector<2x128xf32> to vector<2x1x128xf32>
    %241 = vector.shape_cast %71 : vector<2x128xf32> to vector<2x1x128xf32>
    %242 = vector.shape_cast %99 : vector<2x128xf32> to vector<2x1x128xf32>
    %243 = vector.shape_cast %127 : vector<2x128xf32> to vector<2x1x128xf32>
    %244 = vector.shape_cast %155 : vector<2x128xf32> to vector<2x1x128xf32>
    %245 = vector.shape_cast %183 : vector<2x128xf32> to vector<2x1x128xf32>
    %246 = vector.shape_cast %211 : vector<2x128xf32> to vector<2x1x128xf32>
    %247 = vector.shape_cast %239 : vector<2x128xf32> to vector<2x1x128xf32>
    %248 = tpu.concatenate %240, %241, %242, %243, %244, %245, %246, %247 in 1 : vector<2x1x128xf32>, vector<2x1x128xf32>, vector<2x1x128xf32>, vector<2x1x128xf32>, vector<2x1x128xf32>, vector<2x1x128xf32>, vector<2x1x128xf32>, vector<2x1x128xf32> -> vector<2x8x128xf32>
    %249 = vector.shape_cast %248 : vector<2x8x128xf32> to vector<16x128xf32>
    %c0_46 = arith.constant 0 : index
    %c0_47 = arith.constant 0 : index
    %250 = vector.load %arg5[%c0_46, %c0_47] : memref<128x50xf32, #tpu.memory_space<vmem>>, vector<128x50xf32>
    %cst_48 = arith.constant dense<0.000000e+00> : vector<16x50xf32>
    %251 = tpu.matmul %249, %250, %cst_48 {dimension_numbers = #tpu.dot_dimension_numbers<[1], [0], [0], [1], [0, 0, 1, 1], [], []>} : vector<16x128xf32>, vector<128x50xf32>, vector<16x50xf32> -> vector<16x50xf32>
    %c0_49 = arith.constant 0 : index
    %c0_50 = arith.constant 0 : index
    %252 = vector.load %arg6[%c0_49, %c0_50] : memref<1x50xf32, #tpu.memory_space<vmem>>, vector<1x50xf32>
    %253 = vector.broadcast %252 : vector<1x50xf32> to vector<16x50xf32>
    %254 = arith.addf %251, %253 : vector<16x50xf32>
    %c0_51 = arith.constant 0 : index
    %c0_52 = arith.constant 0 : index
    %255 = vector.load %arg9[%c0_51, %c0_52] : memref<16x50xf32, #tpu.memory_space<vmem>>, vector<16x50xf32>
    tpu.vector_store %arg9[%c0_51, %c0_52], %254 {strides = array<i32>} : memref<16x50xf32, #tpu.memory_space<vmem>>, vector<16x50xf32>,
    return
  }
}

</mosaic_0001>

<llo_original>
// kernel: tpu_custom_call.1
$region0: #{tpu_custom_call.1}
  #allocation0 [shape = 'u32[]', space=smem, size = 0x4, offset = 0x4, fixed_abs, tag = 'smem constant byte address 0x4 - core index']
  #allocation1 [shape = 'u32[144,128]{1,0:T(1,128)}', space=vmem, size = 0x12000, scoped, tag = 'internal scratch']
  %s0 = inlined_call_operand.vmem [shape: s32[16,1], index: 0, kind: input, shape index: {}]
  %s1 = inlined_call_operand.vmem [shape: f32[50,32], index: 1, kind: input, shape index: {}]
  %s2 = inlined_call_operand.vmem [shape: f32[32,512], index: 2, kind: input, shape index: {}]
  %s3 = inlined_call_operand.hbm [shape: f32[128,512], index: 3, kind: input, shape index: {}]
  %s4 = inlined_call_operand.vmem [shape: f32[1,512], index: 4, kind: input, shape index: {}]
  %s5 = inlined_call_operand.vmem [shape: f32[128,50], index: 5, kind: input, shape index: {}]
  %s6 = inlined_call_operand.vmem [shape: f32[1,50], index: 6, kind: input, shape index: {}]
  %s7 = inlined_call_operand.vmem [shape: f32[2,128], index: 7, kind: input, shape index: {}]
  %s8 = inlined_call_operand.vmem [shape: f32[2,128], index: 8, kind: input, shape index: {}]
  %s9 = inlined_call_operand.hbm [shape: f32[16,50], index: 9, kind: output, shape index: {}]
  %s10 = sld [smem:[#allocation0]]
  $region50: #{tpu_custom_call.1} parent=0
    _
  %s12 = ssub.s32 1, %s10
  %s13 = scalar_select 0, %s12, %s10
  $region1: #{tpu_custom_call.1} parent=0
    #allocation2 [shape = 'u8[262144]{0}', space=vmem, size = 0x40000, scoped, tag = 'input window, operand 3, single buffered']
    #allocation3 [shape = 's32[1]{0}', space=sflag, size = 0x4, scoped, tag = 'scoped memory for tpu_custom_call.1']
    #allocation4 [shape = 's32[1]{0}', space=sflag, size = 0x4, scoped, tag = 'scoped memory for tpu_custom_call.1']
    #allocation5 [shape = 'u8[8192]{0}', space=vmem, size = 0x2000, scoped, tag = 'output window, operand 0, single buffered']
    %14 = vsyncpa [#allocation3], 0
    %15 = vsyncpa [#allocation4], 0
    // Predicated region
    $region2: #{tpu_custom_call.1} parent=1 // pred_check
      _
    $region3: #{tpu_custom_call.1} parent=1 // pred_check_branch
      %17 = sbr.rel (0) target = $region5
    $region4: #{tpu_custom_call.1} parent=1 // pred_region
      _
    $region5: #{tpu_custom_call.1} parent=1 // pred_fallthru
      _
    // Predicated region
    $region6: #{tpu_custom_call.1} parent=1 // pred_check
      _
    $region7: #{tpu_custom_call.1} parent=1 // pred_check_branch
      %19 = sbr.rel (0) target = $region9
    $region8: #{tpu_custom_call.1} parent=1 // pred_region
      _
    $region9: #{tpu_custom_call.1} parent=1 // pred_fallthru
      _
    // Predicated region
    $region10: #{tpu_custom_call.1} parent=1 // pred_check
      _
    $region11: #{tpu_custom_call.1} parent=1 // pred_check_branch
      %21 = sbr.rel (0) target = $region13
    $region12: #{tpu_custom_call.1} parent=1 // pred_region
      _
    $region13: #{tpu_custom_call.1} parent=1 // pred_fallthru
      _
    // Predicated region
    $region14: #{tpu_custom_call.1} parent=1 // pred_check
      _
    $region15: #{tpu_custom_call.1} parent=1 // pred_check_branch
      %23 = sbr.rel (0) target = $region17
    $region16: #{tpu_custom_call.1} parent=1 // pred_region
      %s25 = ssub.s32 8192, 8192
      %26 = vsyncadd [#allocation3], %s25
      %s27 = sshll.u32 [#allocation2], 4
      %s28 = int_to_ptr.vmem [resolvable:$true] %s27
      %33 = dma.hbm_to_vmem [thread:$0]  %s3, 8192, %s28, [#allocation3], 512, 512, 32
    $region17: #{tpu_custom_call.1} parent=1 // pred_fallthru
      _
    // Predicated region
    $region18: #{tpu_custom_call.1} parent=1 // pred_check
      _
    $region19: #{tpu_custom_call.1} parent=1 // pred_check_branch
      %35 = sbr.rel (0) target = $region21
    $region20: #{tpu_custom_call.1} parent=1 // pred_region
      _
    $region21: #{tpu_custom_call.1} parent=1 // pred_fallthru
      _
    // Predicated region
    $region22: #{tpu_custom_call.1} parent=1 // pred_check
      _
    $region23: #{tpu_custom_call.1} parent=1 // pred_check_branch
      %37 = sbr.rel (0) target = $region25
    $region24: #{tpu_custom_call.1} parent=1 // pred_region
      _
    $region25: #{tpu_custom_call.1} parent=1 // pred_fallthru
      _
    // Predicated region
    $region26: #{tpu_custom_call.1} parent=1 // pred_check
      _
    $region27: #{tpu_custom_call.1} parent=1 // pred_check_branch
      %39 = sbr.rel (0) target = $region29
    $region28: #{tpu_custom_call.1} parent=1 // pred_region
      _
    $region29: #{tpu_custom_call.1} parent=1 // pred_fallthru
      _
    // Predicated region
    $region30: #{tpu_custom_call.1} parent=1 // pred_check
      _
    $region31: #{tpu_custom_call.1} parent=1 // pred_check_branch
      %41 = sbr.rel (0) target = $region33
    $region32: #{tpu_custom_call.1} parent=1 // pred_region
      _
    $region33: #{tpu_custom_call.1} parent=1 // pred_fallthru
      _
    // Predicated region
    $region34: #{tpu_custom_call.1} parent=1 // pred_check
      _
    $region35: #{tpu_custom_call.1} parent=1 // pred_check_branch
      %43 = sbr.rel (0) target = $region37
    $region36: #{tpu_custom_call.1} parent=1 // pred_region
      _
    $region37: #{tpu_custom_call.1} parent=1 // pred_fallthru
      _
    // Predicated region
    $region38: #{tpu_custom_call.1} parent=1 // pred_check
      _
    $region39: #{tpu_custom_call.1} parent=1 // pred_check_branch
      %45 = sbr.rel (0) target = $region41
    $region40: #{tpu_custom_call.1} parent=1 // pred_region
      %46 = dma.done [#allocation3], 8192
    $region41: #{tpu_custom_call.1} parent=1 // pred_fallthru
      _
    %v47 = vld [vmem:[%s0] sm:$0xff]
    %v48 = vld [vmem:[%s0 + $0x8] sm:$0xff]
    %v49 = vlaneseq
    %v50 = vand.u32 %v49, 127
    %51 = vset.pattern.permute.xlu0 0
    %52 = vperm.xlu0 %51, %v47
    %v53 = vpop.permute.xlu0 %52
    %54 = vset.pattern.permute.xlu0 0
    %55 = vperm.xlu0 %54, %v48
    %v56 = vpop.permute.xlu0 %55
    %vm57 = vcmp.eq.s32.totalorder %v50, %v53
    %vm58 = vcmp.eq.s32.totalorder %v50, %v56
    %v59 = vsel %vm57, 1, 0
    %v60 = vsel %vm58, 1, 0
    %v61 = vcvt.s32.f32 %v59
    %v62 = vcvt.s32.f32 %v60
    %v63 = vld [vmem:[%s1] sm:$0xff]
    %v64 = vld [vmem:[%s1 + $0x8] sm:$0xff]
    %v65 = vld [vmem:[%s1 + $0x10] sm:$0xff]
    %v66 = vld [vmem:[%s1 + $0x18] sm:$0xff]
    %v67 = vld [vmem:[%s1 + $0x20] sm:$0xff]
    %v68 = vld [vmem:[%s1 + $0x28] sm:$0xff]
    %v69 = vld [vmem:[%s1 + $0x30] sm:$0x3]
    %vm70 = vcmask 408576
    %v72 = vsel %vm70, %v61, 0
    %v75 = vsel %vm70, %v62, 0
    %vm77 = vcmask 1041408
    %v79 = vsel %vm77, %v69, 0
    %81 = vmatprep.subr.mxu0 0.0
    %82 = vmatpush1.msra.mxu0 0.0
    %83 = vmatprep.subr.mxu0 0.0
    %84 = vmatpush1.msra.mxu0 0.0
    %85 = vmatprep.subr.mxu0 0.0
    %86 = vmatpush1.msra.mxu0 0.0
    %87 = vmatprep.subr.mxu0 0.0
    %88 = vmatpush1.msra.mxu0 0.0
    %89 = vmatprep.subr.mxu0 0.0
    %90 = vmatpush1.msra.mxu0 0.0
    %91 = vmatprep.subr.mxu0 0.0
    %92 = vmatpush1.msra.mxu0 0.0
    %93 = vmatprep.subr.mxu0 0.0
    %94 = vmatpush1.msra.mxu0 0.0
    %95 = vmatprep.subr.mxu0 0.0
    %96 = vmatpush1.msra.mxu0 0.0
    %97 = vmatprep.subr.mxu0 0.0
    %98 = vmatpush1.msra.mxu0 0.0
    %99 = vmatprep.subr.mxu0 0.0
    %100 = vmatpush1.msra.mxu0 %v79
    %101 = vmatprep.subr.mxu0 0.0
    %102 = vmatpush1.msra.mxu0 %v68
    %103 = vmatprep.subr.mxu0 0.0
    %104 = vmatpush1.msra.mxu0 %v67
    %105 = vmatprep.subr.mxu0 0.0
    %106 = vmatpush1.msra.mxu0 %v66
    %107 = vmatprep.subr.mxu0 0.0
    %108 = vmatpush1.msra.mxu0 %v65
    %109 = vmatprep.subr.mxu0 0.0
    %110 = vmatpush1.msra.mxu0 %v64
    %111 = vmatprep.subr.mxu0 0.0
    %112 = vmatpush1.msra.mxu0 %v63
    %113 = vmatprep.subr.mxu0 0.0
    %114 = vmatpush2.msra.mxu0 0.0
    %115 = vmatprep.subr.mxu0 0.0
    %116 = vmatpush2.msra.mxu0 0.0
    %117 = vmatprep.subr.mxu0 0.0
    %118 = vmatpush2.msra.mxu0 0.0
    %119 = vmatprep.subr.mxu0 0.0
    %120 = vmatpush2.msra.mxu0 0.0
    %121 = vmatprep.subr.mxu0 0.0
    %122 = vmatpush2.msra.mxu0 0.0
    %123 = vmatprep.subr.mxu0 0.0
    %124 = vmatpush2.msra.mxu0 0.0
    %125 = vmatprep.subr.mxu0 0.0
    %126 = vmatpush2.msra.mxu0 0.0
    %127 = vmatprep.subr.mxu0 0.0
    %128 = vmatpush2.msra.mxu0 0.0
    %129 = vmatprep.subr.mxu0 0.0
    %130 = vmatpush2.msra.mxu0 0.0
    %131 = vmatprep.subr.mxu0 0.0
    %132 = vmatpush2.msra.mxu0 0.0
    %133 = vmatprep.subr.mxu0 0.0
    %134 = vmatpush2.msra.mxu0 0.0
    %135 = vmatprep.subr.mxu0 0.0
    %136 = vmatpush2.msra.mxu0 0.0
    %137 = vmatprep.subr.mxu0 0.0
    %138 = vmatpush2.msra.mxu0 0.0
    %139 = vmatprep.subr.mxu0 0.0
    %140 = vmatpush2.msra.mxu0 0.0
    %141 = vmatprep.subr.mxu0 0.0
    %142 = vmatpush2.msra.mxu0 0.0
    %143 = vmatprep.subr.mxu0 0.0
    %144 = vmatpush2.msra.mxu0 0.0
    %145 = vmatprep.mubr.f32.mxu0 0.0
    %146 = vmatmul.mubr.f32.gmra.mxu0 %v72
    %v147 = vpop.f32.mrf.mxu0
    %v148 = vadd.f32 0.0, %v147
    %v149 = vpop.f32.mrf.mxu0
    %150 = vmatprep.mubr.f32.mxu0 0.0
    %151 = vmatmul.mubr.f32.gmra.mxu0 %v75
    %v152 = vpop.f32.mrf.mxu0
    %v153 = vadd.f32 0.0, %v152
    %v154 = vpop.f32.mrf.mxu0
    %155 = vdwg.mxu0
    %v156 = vld [vmem:[%s2] sm:$0xff]
    %v157 = vld [vmem:[%s2 + $0x8] sm:$0xff]
    %v158 = vld [vmem:[%s2 + $0x10] sm:$0xff]
    %v159 = vld [vmem:[%s2 + $0x18] sm:$0xff]
    %v160 = vld [vmem:[%s2 + $0x20] sm:$0xff]
    %v161 = vld [vmem:[%s2 + $0x28] sm:$0xff]
    %v162 = vld [vmem:[%s2 + $0x30] sm:$0xff]
    %v163 = vld [vmem:[%s2 + $0x38] sm:$0xff]
    %v164 = vld [vmem:[%s2 + $0x40] sm:$0xff]
    %v165 = vld [vmem:[%s2 + $0x48] sm:$0xff]
    %v166 = vld [vmem:[%s2 + $0x50] sm:$0xff]
    %v167 = vld [vmem:[%s2 + $0x58] sm:$0xff]
    %v168 = vld [vmem:[%s2 + $0x60] sm:$0xff]
    %v169 = vld [vmem:[%s2 + $0x68] sm:$0xff]
    %v170 = vld [vmem:[%s2 + $0x70] sm:$0xff]
    %v171 = vld [vmem:[%s2 + $0x78] sm:$0xff]
    %v172 = vld [vmem:[%s4] sm:$0xf]
    %v174 = vlaneseq
    %v175 = vshrl.u32 %v174, 7
    %v176 = vsub.s32 0, %v175
    %v177 = vrot.slane %v172, %v176
    %v178 = vlaneseq
    %v179 = vshrl.u32 %v178, 7
    %v180 = vsub.s32 1, %v179
    %v181 = vrot.slane %v172, %v180
    %v182 = vlaneseq
    %v183 = vshrl.u32 %v182, 7
    %v184 = vsub.s32 2, %v183
    %v185 = vrot.slane %v172, %v184
    %v186 = vlaneseq
    %v187 = vshrl.u32 %v186, 7
    %v188 = vsub.s32 3, %v187
    %v189 = vrot.slane %v172, %v188
    %vm194 = vcmask 261120
    %v196 = vsel %vm194, %v148, 0
    %v199 = vsel %vm194, %v153, 0
    %201 = vmatprep.subr.mxu0 0.0
    %202 = vmatpush1.msra.mxu0 0.0
    %203 = vmatprep.subr.mxu0 0.0
    %204 = vmatpush1.msra.mxu0 0.0
    %205 = vmatprep.subr.mxu0 0.0
    %206 = vmatpush1.msra.mxu0 0.0
    %207 = vmatprep.subr.mxu0 0.0
    %208 = vmatpush1.msra.mxu0 0.0
    %209 = vmatprep.subr.mxu0 0.0
    %210 = vmatpush1.msra.mxu0 0.0
    %211 = vmatprep.subr.mxu0 0.0
    %212 = vmatpush1.msra.mxu0 0.0
    %213 = vmatprep.subr.mxu0 0.0
    %214 = vmatpush1.msra.mxu0 0.0
    %215 = vmatprep.subr.mxu0 0.0
    %216 = vmatpush1.msra.mxu0 0.0
    %217 = vmatprep.subr.mxu0 0.0
    %218 = vmatpush1.msra.mxu0 0.0
    %219 = vmatprep.subr.mxu0 0.0
    %220 = vmatpush1.msra.mxu0 0.0
    %221 = vmatprep.subr.mxu0 0.0
    %222 = vmatpush1.msra.mxu0 0.0
    %223 = vmatprep.subr.mxu0 0.0
    %224 = vmatpush1.msra.mxu0 0.0
    %225 = vmatprep.subr.mxu0 %v169
    %226 = vmatpush1.msra.mxu0 %v168
    %227 = vmatprep.subr.mxu0 %v165
    %228 = vmatpush1.msra.mxu0 %v164
    %229 = vmatprep.subr.mxu0 %v161
    %230 = vmatpush1.msra.mxu0 %v160
    %231 = vmatprep.subr.mxu0 %v157
    %232 = vmatpush1.msra.mxu0 %v156
    %233 = vmatprep.subr.mxu0 0.0
    %234 = vmatpush2.msra.mxu0 0.0
    %235 = vmatprep.subr.mxu0 0.0
    %236 = vmatpush2.msra.mxu0 0.0
    %237 = vmatprep.subr.mxu0 0.0
    %238 = vmatpush2.msra.mxu0 0.0
    %239 = vmatprep.subr.mxu0 0.0
    %240 = vmatpush2.msra.mxu0 0.0
    %241 = vmatprep.subr.mxu0 0.0
    %242 = vmatpush2.msra.mxu0 0.0
    %243 = vmatprep.subr.mxu0 0.0
    %244 = vmatpush2.msra.mxu0 0.0
    %245 = vmatprep.subr.mxu0 0.0
    %246 = vmatpush2.msra.mxu0 0.0
    %247 = vmatprep.subr.mxu0 0.0
    %248 = vmatpush2.msra.mxu0 0.0
    %249 = vmatprep.subr.mxu0 0.0
    %250 = vmatpush2.msra.mxu0 0.0
    %251 = vmatprep.subr.mxu0 0.0
    %252 = vmatpush2.msra.mxu0 0.0
    %253 = vmatprep.subr.mxu0 0.0
    %254 = vmatpush2.msra.mxu0 0.0
    %255 = vmatprep.subr.mxu0 0.0
    %256 = vmatpush2.msra.mxu0 0.0
    %257 = vmatprep.subr.mxu0 0.0
    %258 = vmatpush2.msra.mxu0 0.0
    %259 = vmatprep.subr.mxu0 0.0
    %260 = vmatpush2.msra.mxu0 0.0
    %261 = vmatprep.subr.mxu0 0.0
    %262 = vmatpush2.msra.mxu0 0.0
    %263 = vmatprep.subr.mxu0 0.0
    %264 = vmatpush2.msra.mxu0 0.0
    %265 = vmatprep.mubr.f32.mxu0 0.0
    %266 = vmatmul.mubr.f32.gmra.mxu0 %v196
    %v267 = vpop.f32.mrf.mxu0
    %v268 = vadd.f32 %v177, %v267
    %v269 = vpop.f32.mrf.mxu0
    %v270 = vadd.f32 %v181, %v269
    %271 = vmatprep.mubr.f32.mxu0 0.0
    %272 = vmatmul.mubr.f32.gmra.mxu0 %v199
    %v273 = vpop.f32.mrf.mxu0
    %v274 = vadd.f32 %v177, %v273
    %v275 = vpop.f32.mrf.mxu0
    %v276 = vadd.f32 %v181, %v275
    %277 = vdwg.mxu0
    %278 = vmatprep.subr.mxu0 0.0
    %279 = vmatpush1.msra.mxu0 0.0
    %280 = vmatprep.subr.mxu0 0.0
    %281 = vmatpush1.msra.mxu0 0.0
    %282 = vmatprep.subr.mxu0 0.0
    %283 = vmatpush1.msra.mxu0 0.0
    %284 = vmatprep.subr.mxu0 0.0
    %285 = vmatpush1.msra.mxu0 0.0
    %286 = vmatprep.subr.mxu0 0.0
    %287 = vmatpush1.msra.mxu0 0.0
    %288 = vmatprep.subr.mxu0 0.0
    %289 = vmatpush1.msra.mxu0 0.0
    %290 = vmatprep.subr.mxu0 0.0
    %291 = vmatpush1.msra.mxu0 0.0
    %292 = vmatprep.subr.mxu0 0.0
    %293 = vmatpush1.msra.mxu0 0.0
    %294 = vmatprep.subr.mxu0 0.0
    %295 = vmatpush1.msra.mxu0 0.0
    %296 = vmatprep.subr.mxu0 0.0
    %297 = vmatpush1.msra.mxu0 0.0
    %298 = vmatprep.subr.mxu0 0.0
    %299 = vmatpush1.msra.mxu0 0.0
    %300 = vmatprep.subr.mxu0 0.0
    %301 = vmatpush1.msra.mxu0 0.0
    %302 = vmatprep.subr.mxu0 %v171
    %303 = vmatpush1.msra.mxu0 %v170
    %304 = vmatprep.subr.mxu0 %v167
    %305 = vmatpush1.msra.mxu0 %v166
    %306 = vmatprep.subr.mxu0 %v163
    %307 = vmatpush1.msra.mxu0 %v162
    %308 = vmatprep.subr.mxu0 %v159
    %309 = vmatpush1.msra.mxu0 %v158
    %310 = vmatprep.subr.mxu0 0.0
    %311 = vmatpush2.msra.mxu0 0.0
    %312 = vmatprep.subr.mxu0 0.0
    %313 = vmatpush2.msra.mxu0 0.0
    %314 = vmatprep.subr.mxu0 0.0
    %315 = vmatpush2.msra.mxu0 0.0
    %316 = vmatprep.subr.mxu0 0.0
    %317 = vmatpush2.msra.mxu0 0.0
    %318 = vmatprep.subr.mxu0 0.0
    %319 = vmatpush2.msra.mxu0 0.0
    %320 = vmatprep.subr.mxu0 0.0
    %321 = vmatpush2.msra.mxu0 0.0
    %322 = vmatprep.subr.mxu0 0.0
    %323 = vmatpush2.msra.mxu0 0.0
    %324 = vmatprep.subr.mxu0 0.0
    %325 = vmatpush2.msra.mxu0 0.0
    %326 = vmatprep.subr.mxu0 0.0
    %327 = vmatpush2.msra.mxu0 0.0
    %328 = vmatprep.subr.mxu0 0.0
    %329 = vmatpush2.msra.mxu0 0.0
    %330 = vmatprep.subr.mxu0 0.0
    %331 = vmatpush2.msra.mxu0 0.0
    %332 = vmatprep.subr.mxu0 0.0
    %333 = vmatpush2.msra.mxu0 0.0
    %334 = vmatprep.subr.mxu0 0.0
    %335 = vmatpush2.msra.mxu0 0.0
    %336 = vmatprep.subr.mxu0 0.0
    %337 = vmatpush2.msra.mxu0 0.0
    %338 = vmatprep.subr.mxu0 0.0
    %339 = vmatpush2.msra.mxu0 0.0
    %340 = vmatprep.subr.mxu0 0.0
    %341 = vmatpush2.msra.mxu0 0.0
    %342 = vmatprep.mubr.f32.mxu0 0.0
    %343 = vmatmul.mubr.f32.gmra.mxu0 %v196
    %v344 = vpop.f32.mrf.mxu0
    %v345 = vadd.f32 %v185, %v344
    %v346 = vpop.f32.mrf.mxu0
    %v347 = vadd.f32 %v189, %v346
    %348 = vmatprep.mubr.f32.mxu0 0.0
    %349 = vmatmul.mubr.f32.gmra.mxu0 %v199
    %v350 = vpop.f32.mrf.mxu0
    %v351 = vadd.f32 %v185, %v350
    %v352 = vpop.f32.mrf.mxu0
    %v353 = vadd.f32 %v189, %v352
    %354 = vdwg.mxu0
    %v355 = vld [vmem:[#allocation2] sm:$0xff]
    %v356 = vld [vmem:[#allocation2 + $0x8] sm:$0xff]
    %v357 = vld [vmem:[#allocation2 + $0x10] sm:$0xff]
    %v358 = vld [vmem:[#allocation2 + $0x18] sm:$0xff]
    %v359 = vld [vmem:[#allocation2 + $0x20] sm:$0xff]
    %v360 = vld [vmem:[#allocation2 + $0x28] sm:$0xff]
    %v361 = vld [vmem:[#allocation2 + $0x30] sm:$0xff]
    %v362 = vld [vmem:[#allocation2 + $0x38] sm:$0xff]
    %v363 = vld [vmem:[#allocation2 + $0x40] sm:$0xff]
    %v364 = vld [vmem:[#allocation2 + $0x48] sm:$0xff]
    %v365 = vld [vmem:[#allocation2 + $0x50] sm:$0xff]
    %v366 = vld [vmem:[#allocation2 + $0x58] sm:$0xff]
    %v367 = vld [vmem:[#allocation2 + $0x60] sm:$0xff]
    %v368 = vld [vmem:[#allocation2 + $0x68] sm:$0xff]
    %v369 = vld [vmem:[#allocation2 + $0x70] sm:$0xff]
    %v370 = vld [vmem:[#allocation2 + $0x78] sm:$0xff]
    %v371 = vld [vmem:[#allocation2 + $0x80] sm:$0xff]
    %v372 = vld [vmem:[#allocation2 + $0x88] sm:$0xff]
    %v373 = vld [vmem:[#allocation2 + $0x90] sm:$0xff]
    %v374 = vld [vmem:[#allocation2 + $0x98] sm:$0xff]
    %v375 = vld [vmem:[#allocation2 + $0xa0] sm:$0xff]
    %v376 = vld [vmem:[#allocation2 + $0xa8] sm:$0xff]
    %v377 = vld [vmem:[#allocation2 + $0xb0] sm:$0xff]
    %v378 = vld [vmem:[#allocation2 + $0xb8] sm:$0xff]
    %v379 = vld [vmem:[#allocation2 + $0xc0] sm:$0xff]
    %v380 = vld [vmem:[#allocation2 + $0xc8] sm:$0xff]
    %v381 = vld [vmem:[#allocation2 + $0xd0] sm:$0xff]
    %v382 = vld [vmem:[#allocation2 + $0xd8] sm:$0xff]
    %v383 = vld [vmem:[#allocation2 + $0xe0] sm:$0xff]
    %v384 = vld [vmem:[#allocation2 + $0xe8] sm:$0xff]
    %v385 = vld [vmem:[#allocation2 + $0xf0] sm:$0xff]
    %v386 = vld [vmem:[#allocation2 + $0xf8] sm:$0xff]
    %v387 = vld [vmem:[#allocation2 + $0x100] sm:$0xff]
    %v388 = vld [vmem:[#allocation2 + $0x108] sm:$0xff]
    %v389 = vld [vmem:[#allocation2 + $0x110] sm:$0xff]
    %v390 = vld [vmem:[#allocation2 + $0x118] sm:$0xff]
    %v391 = vld [vmem:[#allocation2 + $0x120] sm:$0xff]
    %v392 = vld [vmem:[#allocation2 + $0x128] sm:$0xff]
    %v393 = vld [vmem:[#allocation2 + $0x130] sm:$0xff]
    %v394 = vld [vmem:[#allocation2 + $0x138] sm:$0xff]
    %v395 = vld [vmem:[#allocation2 + $0x140] sm:$0xff]
    %v396 = vld [vmem:[#allocation2 + $0x148] sm:$0xff]
    %v397 = vld [vmem:[#allocation2 + $0x150] sm:$0xff]
    %v398 = vld [vmem:[#allocation2 + $0x158] sm:$0xff]
    %v399 = vld [vmem:[#allocation2 + $0x160] sm:$0xff]
    %v400 = vld [vmem:[#allocation2 + $0x168] sm:$0xff]
    %v401 = vld [vmem:[#allocation2 + $0x170] sm:$0xff]
    %v402 = vld [vmem:[#allocation2 + $0x178] sm:$0xff]
    %v403 = vld [vmem:[#allocation2 + $0x180] sm:$0xff]
    %v404 = vld [vmem:[#allocation2 + $0x188] sm:$0xff]
    %v405 = vld [vmem:[#allocation2 + $0x190] sm:$0xff]
    %v406 = vld [vmem:[#allocation2 + $0x198] sm:$0xff]
    %v407 = vld [vmem:[#allocation2 + $0x1a0] sm:$0xff]
    %v408 = vld [vmem:[#allocation2 + $0x1a8] sm:$0xff]
    %v409 = vld [vmem:[#allocation2 + $0x1b0] sm:$0xff]
    %v410 = vld [vmem:[#allocation2 + $0x1b8] sm:$0xff]
    %v411 = vld [vmem:[#allocation2 + $0x1c0] sm:$0xff]
    %v412 = vld [vmem:[#allocation2 + $0x1c8] sm:$0xff]
    %v413 = vld [vmem:[#allocation2 + $0x1d0] sm:$0xff]
    %v414 = vld [vmem:[#allocation2 + $0x1d8] sm:$0xff]
    %v415 = vld [vmem:[#allocation2 + $0x1e0] sm:$0xff]
    %v416 = vld [vmem:[#allocation2 + $0x1e8] sm:$0xff]
    %v417 = vld [vmem:[#allocation2 + $0x1f0] sm:$0xff]
    %v418 = vld [vmem:[#allocation2 + $0x1f8] sm:$0xff]
    %v419 = vld [vmem:[%s7] sm:$0x3]
    %v420 = vld [vmem:[%s8] sm:$0x3]
    %421 = vmatprep.subr.mxu0 %v416
    %422 = vmatpush1.msra.mxu0 %v415
    %423 = vmatprep.subr.mxu0 %v412
    %424 = vmatpush1.msra.mxu0 %v411
    %425 = vmatprep.subr.mxu0 %v408
    %426 = vmatpush1.msra.mxu0 %v407
    %427 = vmatprep.subr.mxu0 %v404
    %428 = vmatpush1.msra.mxu0 %v403
    %429 = vmatprep.subr.mxu0 %v400
    %430 = vmatpush1.msra.mxu0 %v399
    %431 = vmatprep.subr.mxu0 %v396
    %432 = vmatpush1.msra.mxu0 %v395
    %433 = vmatprep.subr.mxu0 %v392
    %434 = vmatpush1.msra.mxu0 %v391
    %435 = vmatprep.subr.mxu0 %v388
    %436 = vmatpush1.msra.mxu0 %v387
    %437 = vmatprep.subr.mxu0 %v384
    %438 = vmatpush1.msra.mxu0 %v383
    %439 = vmatprep.subr.mxu0 %v380
    %440 = vmatpush1.msra.mxu0 %v379
    %441 = vmatprep.subr.mxu0 %v376
    %442 = vmatpush1.msra.mxu0 %v375
    %443 = vmatprep.subr.mxu0 %v372
    %444 = vmatpush1.msra.mxu0 %v371
    %445 = vmatprep.subr.mxu0 %v368
    %446 = vmatpush1.msra.mxu0 %v367
    %447 = vmatprep.subr.mxu0 %v364
    %448 = vmatpush1.msra.mxu0 %v363
    %449 = vmatprep.subr.mxu0 %v360
    %450 = vmatpush1.msra.mxu0 %v359
    %451 = vmatprep.subr.mxu0 %v356
    %452 = vmatpush1.msra.mxu0 %v355
    %453 = vmatprep.subr.mxu0 0.0
    %454 = vmatpush2.msra.mxu0 0.0
    %455 = vmatprep.subr.mxu0 0.0
    %456 = vmatpush2.msra.mxu0 0.0
    %457 = vmatprep.subr.mxu0 0.0
    %458 = vmatpush2.msra.mxu0 0.0
    %459 = vmatprep.subr.mxu0 0.0
    %460 = vmatpush2.msra.mxu0 0.0
    %461 = vmatprep.subr.mxu0 0.0
    %462 = vmatpush2.msra.mxu0 0.0
    %463 = vmatprep.subr.mxu0 0.0
    %464 = vmatpush2.msra.mxu0 0.0
    %465 = vmatprep.subr.mxu0 0.0
    %466 = vmatpush2.msra.mxu0 0.0
    %467 = vmatprep.subr.mxu0 0.0
    %468 = vmatpush2.msra.mxu0 0.0
    %469 = vmatprep.subr.mxu0 0.0
    %470 = vmatpush2.msra.mxu0 0.0
    %471 = vmatprep.subr.mxu0 0.0
    %472 = vmatpush2.msra.mxu0 0.0
    %473 = vmatprep.subr.mxu0 0.0
    %474 = vmatpush2.msra.mxu0 0.0
    %475 = vmatprep.subr.mxu0 0.0
    %476 = vmatpush2.msra.mxu0 0.0
    %477 = vmatprep.subr.mxu0 0.0
    %478 = vmatpush2.msra.mxu0 0.0
    %479 = vmatprep.subr.mxu0 0.0
    %480 = vmatpush2.msra.mxu0 0.0
    %481 = vmatprep.subr.mxu0 0.0
    %482 = vmatpush2.msra.mxu0 0.0
    %483 = vmatprep.subr.mxu0 0.0
    %484 = vmatpush2.msra.mxu0 0.0
    %485 = vmatprep.mubr.f32.mxu0 0.0
    %486 = vmatmul.mubr.f32.gmra.mxu0 %v419
    %v487 = vpop.f32.mrf.mxu0
    %v488 = vadd.f32 0.0, %v487
    %v489 = vpop.f32.mrf.mxu0
    %v490 = vadd.f32 0.0, %v489
    %491 = vdwg.mxu0
    %492 = vmatprep.subr.mxu0 %v418
    %493 = vmatpush1.msra.mxu0 %v417
    %494 = vmatprep.subr.mxu0 %v414
    %495 = vmatpush1.msra.mxu0 %v413
    %496 = vmatprep.subr.mxu0 %v410
    %497 = vmatpush1.msra.mxu0 %v409
    %498 = vmatprep.subr.mxu0 %v406
    %499 = vmatpush1.msra.mxu0 %v405
    %500 = vmatprep.subr.mxu0 %v402
    %501 = vmatpush1.msra.mxu0 %v401
    %502 = vmatprep.subr.mxu0 %v398
    %503 = vmatpush1.msra.mxu0 %v397
    %504 = vmatprep.subr.mxu0 %v394
    %505 = vmatpush1.msra.mxu0 %v393
    %506 = vmatprep.subr.mxu0 %v390
    %507 = vmatpush1.msra.mxu0 %v389
    %508 = vmatprep.subr.mxu0 %v386
    %509 = vmatpush1.msra.mxu0 %v385
    %510 = vmatprep.subr.mxu0 %v382
    %511 = vmatpush1.msra.mxu0 %v381
    %512 = vmatprep.subr.mxu0 %v378
    %513 = vmatpush1.msra.mxu0 %v377
    %514 = vmatprep.subr.mxu0 %v374
    %515 = vmatpush1.msra.mxu0 %v373
    %516 = vmatprep.subr.mxu0 %v370
    %517 = vmatpush1.msra.mxu0 %v369
    %518 = vmatprep.subr.mxu0 %v366
    %519 = vmatpush1.msra.mxu0 %v365
    %520 = vmatprep.subr.mxu0 %v362
    %521 = vmatpush1.msra.mxu0 %v361
    %522 = vmatprep.subr.mxu0 %v358
    %523 = vmatpush1.msra.mxu0 %v357
    %524 = vmatprep.subr.mxu0 0.0
    %525 = vmatpush2.msra.mxu0 0.0
    %526 = vmatprep.subr.mxu0 0.0
    %527 = vmatpush2.msra.mxu0 0.0
    %528 = vmatprep.subr.mxu0 0.0
    %529 = vmatpush2.msra.mxu0 0.0
    %530 = vmatprep.subr.mxu0 0.0
    %531 = vmatpush2.msra.mxu0 0.0
    %532 = vmatprep.subr.mxu0 0.0
    %533 = vmatpush2.msra.mxu0 0.0
    %534 = vmatprep.subr.mxu0 0.0
    %535 = vmatpush2.msra.mxu0 0.0
    %536 = vmatprep.subr.mxu0 0.0
    %537 = vmatpush2.msra.mxu0 0.0
    %538 = vmatprep.subr.mxu0 0.0
    %539 = vmatpush2.msra.mxu0 0.0
    %540 = vmatprep.subr.mxu0 0.0
    %541 = vmatpush2.msra.mxu0 0.0
    %542 = vmatprep.subr.mxu0 0.0
    %543 = vmatpush2.msra.mxu0 0.0
    %544 = vmatprep.subr.mxu0 0.0
    %545 = vmatpush2.msra.mxu0 0.0
    %546 = vmatprep.subr.mxu0 0.0
    %547 = vmatpush2.msra.mxu0 0.0
    %548 = vmatprep.subr.mxu0 0.0
    %549 = vmatpush2.msra.mxu0 0.0
    %550 = vmatprep.subr.mxu0 0.0
    %551 = vmatpush2.msra.mxu0 0.0
    %552 = vmatprep.subr.mxu0 0.0
    %553 = vmatpush2.msra.mxu0 0.0
    %554 = vmatprep.subr.mxu0 0.0
    %555 = vmatpush2.msra.mxu0 0.0
    %556 = vmatprep.mubr.f32.mxu0 0.0
    %557 = vmatmul.mubr.f32.gmra.mxu0 %v419
    %v558 = vpop.f32.mrf.mxu0
    %v559 = vadd.f32 0.0, %v558
    %v560 = vpop.f32.mrf.mxu0
    %v561 = vadd.f32 0.0, %v560
    %562 = vdwg.mxu0
    %v563 = vadd.f32 %v268, %v488
    %v564 = vadd.f32 %v270, %v490
    %v565 = vadd.f32 %v345, %v559
    %v566 = vadd.f32 %v347, %v561
    %v567 = vxor.u32 %v563, 2147483648
    %v568 = vmul.f32 %v567, 1.442695
    %v569 = vpow.pop %v568
    %v570 = vadd.f32 %v569, 1.0
    %v571 = vrcp.pop %v570
    %v572 = vmul.f32 1.0, %v571
    %v573 = vxor.u32 %v564, 2147483648
    %v574 = vmul.f32 %v573, 1.442695
    %v575 = vpow.pop %v574
    %v576 = vadd.f32 %v575, 1.0
    %v577 = vrcp.pop %v576
    %v578 = vmul.f32 1.0, %v577
    %v579 = vtanh.pop %v565
    %v580 = vxor.u32 %v566, 2147483648
    %v581 = vmul.f32 %v580, 1.442695
    %v582 = vpow.pop %v581
    %v583 = vadd.f32 %v582, 1.0
    %v584 = vrcp.pop %v583
    %v585 = vmul.f32 1.0, %v584
    %v586 = vmul.f32 %v578, %v420
    %v587 = vmul.f32 %v572, %v579
    %v588 = vadd.f32 %v586, %v587
    %v589 = vtanh.pop %v588
    %v590 = vmul.f32 %v585, %v589
    %591 = vmatprep.subr.mxu0 %v416
    %592 = vmatpush1.msra.mxu0 %v415
    %593 = vmatprep.subr.mxu0 %v412
    %594 = vmatpush1.msra.mxu0 %v411
    %595 = vmatprep.subr.mxu0 %v408
    %596 = vmatpush1.msra.mxu0 %v407
    %597 = vmatprep.subr.mxu0 %v404
    %598 = vmatpush1.msra.mxu0 %v403
    %599 = vmatprep.subr.mxu0 %v400
    %600 = vmatpush1.msra.mxu0 %v399
    %601 = vmatprep.subr.mxu0 %v396
    %602 = vmatpush1.msra.mxu0 %v395
    %603 = vmatprep.subr.mxu0 %v392
    %604 = vmatpush1.msra.mxu0 %v391
    %605 = vmatprep.subr.mxu0 %v388
    %606 = vmatpush1.msra.mxu0 %v387
    %607 = vmatprep.subr.mxu0 %v384
    %608 = vmatpush1.msra.mxu0 %v383
    %609 = vmatprep.subr.mxu0 %v380
    %610 = vmatpush1.msra.mxu0 %v379
    %611 = vmatprep.subr.mxu0 %v376
    %612 = vmatpush1.msra.mxu0 %v375
    %613 = vmatprep.subr.mxu0 %v372
    %614 = vmatpush1.msra.mxu0 %v371
    %615 = vmatprep.subr.mxu0 %v368
    %616 = vmatpush1.msra.mxu0 %v367
    %617 = vmatprep.subr.mxu0 %v364
    %618 = vmatpush1.msra.mxu0 %v363
    %619 = vmatprep.subr.mxu0 %v360
    %620 = vmatpush1.msra.mxu0 %v359
    %621 = vmatprep.subr.mxu0 %v356
    %622 = vmatpush1.msra.mxu0 %v355
    %623 = vmatprep.subr.mxu0 0.0
    %624 = vmatpush2.msra.mxu0 0.0
    %625 = vmatprep.subr.mxu0 0.0
    %626 = vmatpush2.msra.mxu0 0.0
    %627 = vmatprep.subr.mxu0 0.0
    %628 = vmatpush2.msra.mxu0 0.0
    %629 = vmatprep.subr.mxu0 0.0
    %630 = vmatpush2.msra.mxu0 0.0
    %631 = vmatprep.subr.mxu0 0.0
    %632 = vmatpush2.msra.mxu0 0.0
    %633 = vmatprep.subr.mxu0 0.0
    %634 = vmatpush2.msra.mxu0 0.0
    %635 = vmatprep.subr.mxu0 0.0
    %636 = vmatpush2.msra.mxu0 0.0
    %637 = vmatprep.subr.mxu0 0.0
    %638 = vmatpush2.msra.mxu0 0.0
    %639 = vmatprep.subr.mxu0 0.0
    %640 = vmatpush2.msra.mxu0 0.0
    %641 = vmatprep.subr.mxu0 0.0
    %642 = vmatpush2.msra.mxu0 0.0
    %643 = vmatprep.subr.mxu0 0.0
    %644 = vmatpush2.msra.mxu0 0.0
    %645 = vmatprep.subr.mxu0 0.0
    %646 = vmatpush2.msra.mxu0 0.0
    %647 = vmatprep.subr.mxu0 0.0
    %648 = vmatpush2.msra.mxu0 0.0
    %649 = vmatprep.subr.mxu0 0.0
    %650 = vmatpush2.msra.mxu0 0.0
    %651 = vmatprep.subr.mxu0 0.0
    %652 = vmatpush2.msra.mxu0 0.0
    %653 = vmatprep.subr.mxu0 0.0
    %654 = vmatpush2.msra.mxu0 0.0
    %655 = vmatprep.mubr.f32.mxu0 0.0
    %656 = vmatmul.mubr.f32.gmra.mxu0 %v590
    %v657 = vpop.f32.mrf.mxu0
    %v658 = vadd.f32 0.0, %v657
    %v659 = vpop.f32.mrf.mxu0
    %v660 = vadd.f32 0.0, %v659
    %661 = vdwg.mxu0
    %662 = vmatprep.subr.mxu0 %v418
    %663 = vmatpush1.msra.mxu0 %v417
    %664 = vmatprep.subr.mxu0 %v414
    %665 = vmatpush1.msra.mxu0 %v413
    %666 = vmatprep.subr.mxu0 %v410
    %667 = vmatpush1.msra.mxu0 %v409
    %668 = vmatprep.subr.mxu0 %v406
    %669 = vmatpush1.msra.mxu0 %v405
    %670 = vmatprep.subr.mxu0 %v402
    %671 = vmatpush1.msra.mxu0 %v401
    %672 = vmatprep.subr.mxu0 %v398
    %673 = vmatpush1.msra.mxu0 %v397
    %674 = vmatprep.subr.mxu0 %v394
    %675 = vmatpush1.msra.mxu0 %v393
    %676 = vmatprep.subr.mxu0 %v390
    %677 = vmatpush1.msra.mxu0 %v389
    %678 = vmatprep.subr.mxu0 %v386
    %679 = vmatpush1.msra.mxu0 %v385
    %680 = vmatprep.subr.mxu0 %v382
    %681 = vmatpush1.msra.mxu0 %v381
    %682 = vmatprep.subr.mxu0 %v378
    %683 = vmatpush1.msra.mxu0 %v377
    %684 = vmatprep.subr.mxu0 %v374
    %685 = vmatpush1.msra.mxu0 %v373
    %686 = vmatprep.subr.mxu0 %v370
    %687 = vmatpush1.msra.mxu0 %v369
    %688 = vmatprep.subr.mxu0 %v366
    %689 = vmatpush1.msra.mxu0 %v365
    %690 = vmatprep.subr.mxu0 %v362
    %691 = vmatpush1.msra.mxu0 %v361
    %692 = vmatprep.subr.mxu0 %v358
    %693 = vmatpush1.msra.mxu0 %v357
    %694 = vmatprep.subr.mxu0 0.0
    %695 = vmatpush2.msra.mxu0 0.0
    %696 = vmatprep.subr.mxu0 0.0
    %697 = vmatpush2.msra.mxu0 0.0
    %698 = vmatprep.subr.mxu0 0.0
    %699 = vmatpush2.msra.mxu0 0.0
    %700 = vmatprep.subr.mxu0 0.0
    %701 = vmatpush2.msra.mxu0 0.0
    %702 = vmatprep.subr.mxu0 0.0
    %703 = vmatpush2.msra.mxu0 0.0
    %704 = vmatprep.subr.mxu0 0.0
    %705 = vmatpush2.msra.mxu0 0.0
    %706 = vmatprep.subr.mxu0 0.0
    %707 = vmatpush2.msra.mxu0 0.0
    %708 = vmatprep.subr.mxu0 0.0
    %709 = vmatpush2.msra.mxu0 0.0
    %710 = vmatprep.subr.mxu0 0.0
    %711 = vmatpush2.msra.mxu0 0.0
    %712 = vmatprep.subr.mxu0 0.0
    %713 = vmatpush2.msra.mxu0 0.0
    %714 = vmatprep.subr.mxu0 0.0
    %715 = vmatpush2.msra.mxu0 0.0
    %716 = vmatprep.subr.mxu0 0.0
    %717 = vmatpush2.msra.mxu0 0.0
    %718 = vmatprep.subr.mxu0 0.0
    %719 = vmatpush2.msra.mxu0 0.0
    %720 = vmatprep.subr.mxu0 0.0
    %721 = vmatpush2.msra.mxu0 0.0
    %722 = vmatprep.subr.mxu0 0.0
    %723 = vmatpush2.msra.mxu0 0.0
    %724 = vmatprep.subr.mxu0 0.0
    %725 = vmatpush2.msra.mxu0 0.0
    %726 = vmatprep.mubr.f32.mxu0 0.0
    %727 = vmatmul.mubr.f32.gmra.mxu0 %v590
    %v728 = vpop.f32.mrf.mxu0
    %v729 = vadd.f32 0.0, %v728
    %v730 = vpop.f32.mrf.mxu0
    %v731 = vadd.f32 0.0, %v730
    %732 = vdwg.mxu0
    %v737 = vrot.slane %v658, 6
    %v738 = vrot.slane %v660, 6
    %v739 = vrot.slane %v729, 6
    %v740 = vrot.slane %v731, 6
    %v745 = vadd.f32 %v268, %v737
    %v746 = vadd.f32 %v270, %v738
    %v747 = vadd.f32 %v345, %v739
    %v748 = vadd.f32 %v347, %v740
    %v749 = vxor.u32 %v745, 2147483648
    %v750 = vmul.f32 %v749, 1.442695
    %v751 = vpow.pop %v750
    %v752 = vadd.f32 %v751, 1.0
    %v753 = vrcp.pop %v752
    %v754 = vmul.f32 1.0, %v753
    %v755 = vxor.u32 %v746, 2147483648
    %v756 = vmul.f32 %v755, 1.442695
    %v757 = vpow.pop %v756
    %v758 = vadd.f32 %v757, 1.0
    %v759 = vrcp.pop %v758
    %v760 = vmul.f32 1.0, %v759
    %v761 = vtanh.pop %v747
    %v762 = vxor.u32 %v748, 2147483648
    %v763 = vmul.f32 %v762, 1.442695
    %v764 = vpow.pop %v763
    %v765 = vadd.f32 %v764, 1.0
    %v766 = vrcp.pop %v765
    %v767 = vmul.f32 1.0, %v766
    %v769 = vrot.slane %v588, 6
    %v771 = vmul.f32 %v760, %v769
    %v772 = vmul.f32 %v754, %v761
    %v773 = vadd.f32 %v771, %v772
    %v774 = vtanh.pop %v773
    %v775 = vmul.f32 %v767, %v774
    %v777 = vrot.slane %v775, 2
    %779 = vmatprep.subr.mxu0 %v416
    %780 = vmatpush1.msra.mxu0 %v415
    %781 = vmatprep.subr.mxu0 %v412
    %782 = vmatpush1.msra.mxu0 %v411
    %783 = vmatprep.subr.mxu0 %v408
    %784 = vmatpush1.msra.mxu0 %v407
    %785 = vmatprep.subr.mxu0 %v404
    %786 = vmatpush1.msra.mxu0 %v403
    %787 = vmatprep.subr.mxu0 %v400
    %788 = vmatpush1.msra.mxu0 %v399
    %789 = vmatprep.subr.mxu0 %v396
    %790 = vmatpush1.msra.mxu0 %v395
    %791 = vmatprep.subr.mxu0 %v392
    %792 = vmatpush1.msra.mxu0 %v391
    %793 = vmatprep.subr.mxu0 %v388
    %794 = vmatpush1.msra.mxu0 %v387
    %795 = vmatprep.subr.mxu0 %v384
    %796 = vmatpush1.msra.mxu0 %v383
    %797 = vmatprep.subr.mxu0 %v380
    %798 = vmatpush1.msra.mxu0 %v379
    %799 = vmatprep.subr.mxu0 %v376
    %800 = vmatpush1.msra.mxu0 %v375
    %801 = vmatprep.subr.mxu0 %v372
    %802 = vmatpush1.msra.mxu0 %v371
    %803 = vmatprep.subr.mxu0 %v368
    %804 = vmatpush1.msra.mxu0 %v367
    %805 = vmatprep.subr.mxu0 %v364
    %806 = vmatpush1.msra.mxu0 %v363
    %807 = vmatprep.subr.mxu0 %v360
    %808 = vmatpush1.msra.mxu0 %v359
    %809 = vmatprep.subr.mxu0 %v356
    %810 = vmatpush1.msra.mxu0 %v355
    %811 = vmatprep.subr.mxu0 0.0
    %812 = vmatpush2.msra.mxu0 0.0
    %813 = vmatprep.subr.mxu0 0.0
    %814 = vmatpush2.msra.mxu0 0.0
    %815 = vmatprep.subr.mxu0 0.0
    %816 = vmatpush2.msra.mxu0 0.0
    %817 = vmatprep.subr.mxu0 0.0
    %818 = vmatpush2.msra.mxu0 0.0
    %819 = vmatprep.subr.mxu0 0.0
    %820 = vmatpush2.msra.mxu0 0.0
    %821 = vmatprep.subr.mxu0 0.0
    %822 = vmatpush2.msra.mxu0 0.0
    %823 = vmatprep.subr.mxu0 0.0
    %824 = vmatpush2.msra.mxu0 0.0
    %825 = vmatprep.subr.mxu0 0.0
    %826 = vmatpush2.msra.mxu0 0.0
    %827 = vmatprep.subr.mxu0 0.0
    %828 = vmatpush2.msra.mxu0 0.0
    %829 = vmatprep.subr.mxu0 0.0
    %830 = vmatpush2.msra.mxu0 0.0
    %831 = vmatprep.subr.mxu0 0.0
    %832 = vmatpush2.msra.mxu0 0.0
    %833 = vmatprep.subr.mxu0 0.0
    %834 = vmatpush2.msra.mxu0 0.0
    %835 = vmatprep.subr.mxu0 0.0
    %836 = vmatpush2.msra.mxu0 0.0
    %837 = vmatprep.subr.mxu0 0.0
    %838 = vmatpush2.msra.mxu0 0.0
    %839 = vmatprep.subr.mxu0 0.0
    %840 = vmatpush2.msra.mxu0 0.0
    %841 = vmatprep.subr.mxu0 0.0
    %842 = vmatpush2.msra.mxu0 0.0
    %843 = vmatprep.mubr.f32.mxu0 0.0
    %844 = vmatmul.mubr.f32.gmra.mxu0 %v777
    %v845 = vpop.f32.mrf.mxu0
    %v846 = vadd.f32 0.0, %v845
    %v847 = vpop.f32.mrf.mxu0
    %v848 = vadd.f32 0.0, %v847
    %849 = vdwg.mxu0
    %850 = vmatprep.subr.mxu0 %v418
    %851 = vmatpush1.msra.mxu0 %v417
    %852 = vmatprep.subr.mxu0 %v414
    %853 = vmatpush1.msra.mxu0 %v413
    %854 = vmatprep.subr.mxu0 %v410
    %855 = vmatpush1.msra.mxu0 %v409
    %856 = vmatprep.subr.mxu0 %v406
    %857 = vmatpush1.msra.mxu0 %v405
    %858 = vmatprep.subr.mxu0 %v402
    %859 = vmatpush1.msra.mxu0 %v401
    %860 = vmatprep.subr.mxu0 %v398
    %861 = vmatpush1.msra.mxu0 %v397
    %862 = vmatprep.subr.mxu0 %v394
    %863 = vmatpush1.msra.mxu0 %v393
    %864 = vmatprep.subr.mxu0 %v390
    %865 = vmatpush1.msra.mxu0 %v389
    %866 = vmatprep.subr.mxu0 %v386
    %867 = vmatpush1.msra.mxu0 %v385
    %868 = vmatprep.subr.mxu0 %v382
    %869 = vmatpush1.msra.mxu0 %v381
    %870 = vmatprep.subr.mxu0 %v378
    %871 = vmatpush1.msra.mxu0 %v377
    %872 = vmatprep.subr.mxu0 %v374
    %873 = vmatpush1.msra.mxu0 %v373
    %874 = vmatprep.subr.mxu0 %v370
    %875 = vmatpush1.msra.mxu0 %v369
    %876 = vmatprep.subr.mxu0 %v366
    %877 = vmatpush1.msra.mxu0 %v365
    %878 = vmatprep.subr.mxu0 %v362
    %879 = vmatpush1.msra.mxu0 %v361
    %880 = vmatprep.subr.mxu0 %v358
    %881 = vmatpush1.msra.mxu0 %v357
    %882 = vmatprep.subr.mxu0 0.0
    %883 = vmatpush2.msra.mxu0 0.0
    %884 = vmatprep.subr.mxu0 0.0
    %885 = vmatpush2.msra.mxu0 0.0
    %886 = vmatprep.subr.mxu0 0.0
    %887 = vmatpush2.msra.mxu0 0.0
    %888 = vmatprep.subr.mxu0 0.0
    %889 = vmatpush2.msra.mxu0 0.0
    %890 = vmatprep.subr.mxu0 0.0
    %891 = vmatpush2.msra.mxu0 0.0
    %892 = vmatprep.subr.mxu0 0.0
    %893 = vmatpush2.msra.mxu0 0.0
    %894 = vmatprep.subr.mxu0 0.0
    %895 = vmatpush2.msra.mxu0 0.0
    %896 = vmatprep.subr.mxu0 0.0
    %897 = vmatpush2.msra.mxu0 0.0
    %898 = vmatprep.subr.mxu0 0.0
    %899 = vmatpush2.msra.mxu0 0.0
    %900 = vmatprep.subr.mxu0 0.0
    %901 = vmatpush2.msra.mxu0 0.0
    %902 = vmatprep.subr.mxu0 0.0
    %903 = vmatpush2.msra.mxu0 0.0
    %904 = vmatprep.subr.mxu0 0.0
    %905 = vmatpush2.msra.mxu0 0.0
    %906 = vmatprep.subr.mxu0 0.0
    %907 = vmatpush2.msra.mxu0 0.0
    %908 = vmatprep.subr.mxu0 0.0
    %909 = vmatpush2.msra.mxu0 0.0
    %910 = vmatprep.subr.mxu0 0.0
    %911 = vmatpush2.msra.mxu0 0.0
    %912 = vmatprep.subr.mxu0 0.0
    %913 = vmatpush2.msra.mxu0 0.0
    %914 = vmatprep.mubr.f32.mxu0 0.0
    %915 = vmatmul.mubr.f32.gmra.mxu0 %v777
    %v916 = vpop.f32.mrf.mxu0
    %v917 = vadd.f32 0.0, %v916
    %v918 = vpop.f32.mrf.mxu0
    %v919 = vadd.f32 0.0, %v918
    %920 = vdwg.mxu0
    %v925 = vrot.slane %v846, 4
    %v926 = vrot.slane %v848, 4
    %v927 = vrot.slane %v917, 4
    %v928 = vrot.slane %v919, 4
    %v933 = vadd.f32 %v268, %v925
    %v934 = vadd.f32 %v270, %v926
    %v935 = vadd.f32 %v345, %v927
    %v936 = vadd.f32 %v347, %v928
    %v937 = vxor.u32 %v933, 2147483648
    %v938 = vmul.f32 %v937, 1.442695
    %v939 = vpow.pop %v938
    %v940 = vadd.f32 %v939, 1.0
    %v941 = vrcp.pop %v940
    %v942 = vmul.f32 1.0, %v941
    %v943 = vxor.u32 %v934, 2147483648
    %v944 = vmul.f32 %v943, 1.442695
    %v945 = vpow.pop %v944
    %v946 = vadd.f32 %v945, 1.0
    %v947 = vrcp.pop %v946
    %v948 = vmul.f32 1.0, %v947
    %v949 = vtanh.pop %v935
    %v950 = vxor.u32 %v936, 2147483648
    %v951 = vmul.f32 %v950, 1.442695
    %v952 = vpow.pop %v951
    %v953 = vadd.f32 %v952, 1.0
    %v954 = vrcp.pop %v953
    %v955 = vmul.f32 1.0, %v954
    %v957 = vrot.slane %v773, 6
    %v959 = vmul.f32 %v948, %v957
    %v960 = vmul.f32 %v942, %v949
    %v961 = vadd.f32 %v959, %v960
    %v962 = vtanh.pop %v961
    %v963 = vmul.f32 %v955, %v962
    %v965 = vrot.slane %v963, 4
    %967 = vmatprep.subr.mxu0 %v416
    %968 = vmatpush1.msra.mxu0 %v415
    %969 = vmatprep.subr.mxu0 %v412
    %970 = vmatpush1.msra.mxu0 %v411
    %971 = vmatprep.subr.mxu0 %v408
    %972 = vmatpush1.msra.mxu0 %v407
    %973 = vmatprep.subr.mxu0 %v404
    %974 = vmatpush1.msra.mxu0 %v403
    %975 = vmatprep.subr.mxu0 %v400
    %976 = vmatpush1.msra.mxu0 %v399
    %977 = vmatprep.subr.mxu0 %v396
    %978 = vmatpush1.msra.mxu0 %v395
    %979 = vmatprep.subr.mxu0 %v392
    %980 = vmatpush1.msra.mxu0 %v391
    %981 = vmatprep.subr.mxu0 %v388
    %982 = vmatpush1.msra.mxu0 %v387
    %983 = vmatprep.subr.mxu0 %v384
    %984 = vmatpush1.msra.mxu0 %v383
    %985 = vmatprep.subr.mxu0 %v380
    %986 = vmatpush1.msra.mxu0 %v379
    %987 = vmatprep.subr.mxu0 %v376
    %988 = vmatpush1.msra.mxu0 %v375
    %989 = vmatprep.subr.mxu0 %v372
    %990 = vmatpush1.msra.mxu0 %v371
    %991 = vmatprep.subr.mxu0 %v368
    %992 = vmatpush1.msra.mxu0 %v367
    %993 = vmatprep.subr.mxu0 %v364
    %994 = vmatpush1.msra.mxu0 %v363
    %995 = vmatprep.subr.mxu0 %v360
    %996 = vmatpush1.msra.mxu0 %v359
    %997 = vmatprep.subr.mxu0 %v356
    %998 = vmatpush1.msra.mxu0 %v355
    %999 = vmatprep.subr.mxu0 0.0
    %1000 = vmatpush2.msra.mxu0 0.0
    %1001 = vmatprep.subr.mxu0 0.0
    %1002 = vmatpush2.msra.mxu0 0.0
    %1003 = vmatprep.subr.mxu0 0.0
    %1004 = vmatpush2.msra.mxu0 0.0
    %1005 = vmatprep.subr.mxu0 0.0
    %1006 = vmatpush2.msra.mxu0 0.0
    %1007 = vmatprep.subr.mxu0 0.0
    %1008 = vmatpush2.msra.mxu0 0.0
    %1009 = vmatprep.subr.mxu0 0.0
    %1010 = vmatpush2.msra.mxu0 0.0
    %1011 = vmatprep.subr.mxu0 0.0
    %1012 = vmatpush2.msra.mxu0 0.0
    %1013 = vmatprep.subr.mxu0 0.0
    %1014 = vmatpush2.msra.mxu0 0.0
    %1015 = vmatprep.subr.mxu0 0.0
    %1016 = vmatpush2.msra.mxu0 0.0
    %1017 = vmatprep.subr.mxu0 0.0
    %1018 = vmatpush2.msra.mxu0 0.0
    %1019 = vmatprep.subr.mxu0 0.0
    %1020 = vmatpush2.msra.mxu0 0.0
    %1021 = vmatprep.subr.mxu0 0.0
    %1022 = vmatpush2.msra.mxu0 0.0
    %1023 = vmatprep.subr.mxu0 0.0
    %1024 = vmatpush2.msra.mxu0 0.0
    %1025 = vmatprep.subr.mxu0 0.0
    %1026 = vmatpush2.msra.mxu0 0.0
    %1027 = vmatprep.subr.mxu0 0.0
    %1028 = vmatpush2.msra.mxu0 0.0
    %1029 = vmatprep.subr.mxu0 0.0
    %1030 = vmatpush2.msra.mxu0 0.0
    %1031 = vmatprep.mubr.f32.mxu0 0.0
    %1032 = vmatmul.mubr.f32.gmra.mxu0 %v965
    %v1033 = vpop.f32.mrf.mxu0
    %v1034 = vadd.f32 0.0, %v1033
    %v1035 = vpop.f32.mrf.mxu0
    %v1036 = vadd.f32 0.0, %v1035
    %1037 = vdwg.mxu0
    %1038 = vmatprep.subr.mxu0 %v418
    %1039 = vmatpush1.msra.mxu0 %v417
    %1040 = vmatprep.subr.mxu0 %v414
    %1041 = vmatpush1.msra.mxu0 %v413
    %1042 = vmatprep.subr.mxu0 %v410
    %1043 = vmatpush1.msra.mxu0 %v409
    %1044 = vmatprep.subr.mxu0 %v406
    %1045 = vmatpush1.msra.mxu0 %v405
    %1046 = vmatprep.subr.mxu0 %v402
    %1047 = vmatpush1.msra.mxu0 %v401
    %1048 = vmatprep.subr.mxu0 %v398
    %1049 = vmatpush1.msra.mxu0 %v397
    %1050 = vmatprep.subr.mxu0 %v394
    %1051 = vmatpush1.msra.mxu0 %v393
    %1052 = vmatprep.subr.mxu0 %v390
    %1053 = vmatpush1.msra.mxu0 %v389
    %1054 = vmatprep.subr.mxu0 %v386
    %1055 = vmatpush1.msra.mxu0 %v385
    %1056 = vmatprep.subr.mxu0 %v382
    %1057 = vmatpush1.msra.mxu0 %v381
    %1058 = vmatprep.subr.mxu0 %v378
    %1059 = vmatpush1.msra.mxu0 %v377
    %1060 = vmatprep.subr.mxu0 %v374
    %1061 = vmatpush1.msra.mxu0 %v373
    %1062 = vmatprep.subr.mxu0 %v370
    %1063 = vmatpush1.msra.mxu0 %v369
    %1064 = vmatprep.subr.mxu0 %v366
    %1065 = vmatpush1.msra.mxu0 %v365
    %1066 = vmatprep.subr.mxu0 %v362
    %1067 = vmatpush1.msra.mxu0 %v361
    %1068 = vmatprep.subr.mxu0 %v358
    %1069 = vmatpush1.msra.mxu0 %v357
    %1070 = vmatprep.subr.mxu0 0.0
    %1071 = vmatpush2.msra.mxu0 0.0
    %1072 = vmatprep.subr.mxu0 0.0
    %1073 = vmatpush2.msra.mxu0 0.0
    %1074 = vmatprep.subr.mxu0 0.0
    %1075 = vmatpush2.msra.mxu0 0.0
    %1076 = vmatprep.subr.mxu0 0.0
    %1077 = vmatpush2.msra.mxu0 0.0
    %1078 = vmatprep.subr.mxu0 0.0
    %1079 = vmatpush2.msra.mxu0 0.0
    %1080 = vmatprep.subr.mxu0 0.0
    %1081 = vmatpush2.msra.mxu0 0.0
    %1082 = vmatprep.subr.mxu0 0.0
    %1083 = vmatpush2.msra.mxu0 0.0
    %1084 = vmatprep.subr.mxu0 0.0
    %1085 = vmatpush2.msra.mxu0 0.0
    %1086 = vmatprep.subr.mxu0 0.0
    %1087 = vmatpush2.msra.mxu0 0.0
    %1088 = vmatprep.subr.mxu0 0.0
    %1089 = vmatpush2.msra.mxu0 0.0
    %1090 = vmatprep.subr.mxu0 0.0
    %1091 = vmatpush2.msra.mxu0 0.0
    %1092 = vmatprep.subr.mxu0 0.0
    %1093 = vmatpush2.msra.mxu0 0.0
    %1094 = vmatprep.subr.mxu0 0.0
    %1095 = vmatpush2.msra.mxu0 0.0
    %1096 = vmatprep.subr.mxu0 0.0
    %1097 = vmatpush2.msra.mxu0 0.0
    %1098 = vmatprep.subr.mxu0 0.0
    %1099 = vmatpush2.msra.mxu0 0.0
    %1100 = vmatprep.subr.mxu0 0.0
    %1101 = vmatpush2.msra.mxu0 0.0
    %1102 = vmatprep.mubr.f32.mxu0 0.0
    %1103 = vmatmul.mubr.f32.gmra.mxu0 %v965
    %v1104 = vpop.f32.mrf.mxu0
    %v1105 = vadd.f32 0.0, %v1104
    %v1106 = vpop.f32.mrf.mxu0
    %v1107 = vadd.f32 0.0, %v1106
    %1108 = vdwg.mxu0
    %v1113 = vrot.slane %v1034, 2
    %v1114 = vrot.slane %v1036, 2
    %v1115 = vrot.slane %v1105, 2
    %v1116 = vrot.slane %v1107, 2
    %v1121 = vadd.f32 %v268, %v1113
    %v1122 = vadd.f32 %v270, %v1114
    %v1123 = vadd.f32 %v345, %v1115
    %v1124 = vadd.f32 %v347, %v1116
    %v1125 = vxor.u32 %v1121, 2147483648
    %v1126 = vmul.f32 %v1125, 1.442695
    %v1127 = vpow.pop %v1126
    %v1128 = vadd.f32 %v1127, 1.0
    %v1129 = vrcp.pop %v1128
    %v1130 = vmul.f32 1.0, %v1129
    %v1131 = vxor.u32 %v1122, 2147483648
    %v1132 = vmul.f32 %v1131, 1.442695
    %v1133 = vpow.pop %v1132
    %v1134 = vadd.f32 %v1133, 1.0
    %v1135 = vrcp.pop %v1134
    %v1136 = vmul.f32 1.0, %v1135
    %v1137 = vtanh.pop %v1123
    %v1138 = vxor.u32 %v1124, 2147483648
    %v1139 = vmul.f32 %v1138, 1.442695
    %v1140 = vpow.pop %v1139
    %v1141 = vadd.f32 %v1140, 1.0
    %v1142 = vrcp.pop %v1141
    %v1143 = vmul.f32 1.0, %v1142
    %v1145 = vrot.slane %v961, 6
    %v1147 = vmul.f32 %v1136, %v1145
    %v1148 = vmul.f32 %v1130, %v1137
    %v1149 = vadd.f32 %v1147, %v1148
    %v1150 = vtanh.pop %v1149
    %v1151 = vmul.f32 %v1143, %v1150
    %v1153 = vrot.slane %v1151, 6
    %1155 = vmatprep.subr.mxu0 %v416
    %1156 = vmatpush1.msra.mxu0 %v415
    %1157 = vmatprep.subr.mxu0 %v412
    %1158 = vmatpush1.msra.mxu0 %v411
    %1159 = vmatprep.subr.mxu0 %v408
    %1160 = vmatpush1.msra.mxu0 %v407
    %1161 = vmatprep.subr.mxu0 %v404
    %1162 = vmatpush1.msra.mxu0 %v403
    %1163 = vmatprep.subr.mxu0 %v400
    %1164 = vmatpush1.msra.mxu0 %v399
    %1165 = vmatprep.subr.mxu0 %v396
    %1166 = vmatpush1.msra.mxu0 %v395
    %1167 = vmatprep.subr.mxu0 %v392
    %1168 = vmatpush1.msra.mxu0 %v391
    %1169 = vmatprep.subr.mxu0 %v388
    %1170 = vmatpush1.msra.mxu0 %v387
    %1171 = vmatprep.subr.mxu0 %v384
    %1172 = vmatpush1.msra.mxu0 %v383
    %1173 = vmatprep.subr.mxu0 %v380
    %1174 = vmatpush1.msra.mxu0 %v379
    %1175 = vmatprep.subr.mxu0 %v376
    %1176 = vmatpush1.msra.mxu0 %v375
    %1177 = vmatprep.subr.mxu0 %v372
    %1178 = vmatpush1.msra.mxu0 %v371
    %1179 = vmatprep.subr.mxu0 %v368
    %1180 = vmatpush1.msra.mxu0 %v367
    %1181 = vmatprep.subr.mxu0 %v364
    %1182 = vmatpush1.msra.mxu0 %v363
    %1183 = vmatprep.subr.mxu0 %v360
    %1184 = vmatpush1.msra.mxu0 %v359
    %1185 = vmatprep.subr.mxu0 %v356
    %1186 = vmatpush1.msra.mxu0 %v355
    %1187 = vmatprep.subr.mxu0 0.0
    %1188 = vmatpush2.msra.mxu0 0.0
    %1189 = vmatprep.subr.mxu0 0.0
    %1190 = vmatpush2.msra.mxu0 0.0
    %1191 = vmatprep.subr.mxu0 0.0
    %1192 = vmatpush2.msra.mxu0 0.0
    %1193 = vmatprep.subr.mxu0 0.0
    %1194 = vmatpush2.msra.mxu0 0.0
    %1195 = vmatprep.subr.mxu0 0.0
    %1196 = vmatpush2.msra.mxu0 0.0
    %1197 = vmatprep.subr.mxu0 0.0
    %1198 = vmatpush2.msra.mxu0 0.0
    %1199 = vmatprep.subr.mxu0 0.0
    %1200 = vmatpush2.msra.mxu0 0.0
    %1201 = vmatprep.subr.mxu0 0.0
    %1202 = vmatpush2.msra.mxu0 0.0
    %1203 = vmatprep.subr.mxu0 0.0
    %1204 = vmatpush2.msra.mxu0 0.0
    %1205 = vmatprep.subr.mxu0 0.0
    %1206 = vmatpush2.msra.mxu0 0.0
    %1207 = vmatprep.subr.mxu0 0.0
    %1208 = vmatpush2.msra.mxu0 0.0
    %1209 = vmatprep.subr.mxu0 0.0
    %1210 = vmatpush2.msra.mxu0 0.0
    %1211 = vmatprep.subr.mxu0 0.0
    %1212 = vmatpush2.msra.mxu0 0.0
    %1213 = vmatprep.subr.mxu0 0.0
    %1214 = vmatpush2.msra.mxu0 0.0
    %1215 = vmatprep.subr.mxu0 0.0
    %1216 = vmatpush2.msra.mxu0 0.0
    %1217 = vmatprep.subr.mxu0 0.0
    %1218 = vmatpush2.msra.mxu0 0.0
    %1219 = vmatprep.mubr.f32.mxu0 0.0
    %1220 = vmatmul.mubr.f32.gmra.mxu0 %v1153
    %v1221 = vpop.f32.mrf.mxu0
    %v1222 = vadd.f32 0.0, %v1221
    %v1223 = vpop.f32.mrf.mxu0
    %v1224 = vadd.f32 0.0, %v1223
    %1225 = vdwg.mxu0
    %1226 = vmatprep.subr.mxu0 %v418
    %1227 = vmatpush1.msra.mxu0 %v417
    %1228 = vmatprep.subr.mxu0 %v414
    %1229 = vmatpush1.msra.mxu0 %v413
    %1230 = vmatprep.subr.mxu0 %v410
    %1231 = vmatpush1.msra.mxu0 %v409
    %1232 = vmatprep.subr.mxu0 %v406
    %1233 = vmatpush1.msra.mxu0 %v405
    %1234 = vmatprep.subr.mxu0 %v402
    %1235 = vmatpush1.msra.mxu0 %v401
    %1236 = vmatprep.subr.mxu0 %v398
    %1237 = vmatpush1.msra.mxu0 %v397
    %1238 = vmatprep.subr.mxu0 %v394
    %1239 = vmatpush1.msra.mxu0 %v393
    %1240 = vmatprep.subr.mxu0 %v390
    %1241 = vmatpush1.msra.mxu0 %v389
    %1242 = vmatprep.subr.mxu0 %v386
    %1243 = vmatpush1.msra.mxu0 %v385
    %1244 = vmatprep.subr.mxu0 %v382
    %1245 = vmatpush1.msra.mxu0 %v381
    %1246 = vmatprep.subr.mxu0 %v378
    %1247 = vmatpush1.msra.mxu0 %v377
    %1248 = vmatprep.subr.mxu0 %v374
    %1249 = vmatpush1.msra.mxu0 %v373
    %1250 = vmatprep.subr.mxu0 %v370
    %1251 = vmatpush1.msra.mxu0 %v369
    %1252 = vmatprep.subr.mxu0 %v366
    %1253 = vmatpush1.msra.mxu0 %v365
    %1254 = vmatprep.subr.mxu0 %v362
    %1255 = vmatpush1.msra.mxu0 %v361
    %1256 = vmatprep.subr.mxu0 %v358
    %1257 = vmatpush1.msra.mxu0 %v357
    %1258 = vmatprep.subr.mxu0 0.0
    %1259 = vmatpush2.msra.mxu0 0.0
    %1260 = vmatprep.subr.mxu0 0.0
    %1261 = vmatpush2.msra.mxu0 0.0
    %1262 = vmatprep.subr.mxu0 0.0
    %1263 = vmatpush2.msra.mxu0 0.0
    %1264 = vmatprep.subr.mxu0 0.0
    %1265 = vmatpush2.msra.mxu0 0.0
    %1266 = vmatprep.subr.mxu0 0.0
    %1267 = vmatpush2.msra.mxu0 0.0
    %1268 = vmatprep.subr.mxu0 0.0
    %1269 = vmatpush2.msra.mxu0 0.0
    %1270 = vmatprep.subr.mxu0 0.0
    %1271 = vmatpush2.msra.mxu0 0.0
    %1272 = vmatprep.subr.mxu0 0.0
    %1273 = vmatpush2.msra.mxu0 0.0
    %1274 = vmatprep.subr.mxu0 0.0
    %1275 = vmatpush2.msra.mxu0 0.0
    %1276 = vmatprep.subr.mxu0 0.0
    %1277 = vmatpush2.msra.mxu0 0.0
    %1278 = vmatprep.subr.mxu0 0.0
    %1279 = vmatpush2.msra.mxu0 0.0
    %1280 = vmatprep.subr.mxu0 0.0
    %1281 = vmatpush2.msra.mxu0 0.0
    %1282 = vmatprep.subr.mxu0 0.0
    %1283 = vmatpush2.msra.mxu0 0.0
    %1284 = vmatprep.subr.mxu0 0.0
    %1285 = vmatpush2.msra.mxu0 0.0
    %1286 = vmatprep.subr.mxu0 0.0
    %1287 = vmatpush2.msra.mxu0 0.0
    %1288 = vmatprep.subr.mxu0 0.0
    %1289 = vmatpush2.msra.mxu0 0.0
    %1290 = vmatprep.mubr.f32.mxu0 0.0
    %1291 = vmatmul.mubr.f32.gmra.mxu0 %v1153
    %v1292 = vpop.f32.mrf.mxu0
    %v1293 = vadd.f32 0.0, %v1292
    %v1294 = vpop.f32.mrf.mxu0
    %v1295 = vadd.f32 0.0, %v1294
    %1296 = vdwg.mxu0
    %v1297 = vadd.f32 %v274, %v1222
    %v1298 = vadd.f32 %v276, %v1224
    %v1299 = vadd.f32 %v351, %v1293
    %v1300 = vadd.f32 %v353, %v1295
    %v1301 = vxor.u32 %v1297, 2147483648
    %v1302 = vmul.f32 %v1301, 1.442695
    %v1303 = vpow.pop %v1302
    %v1304 = vadd.f32 %v1303, 1.0
    %v1305 = vrcp.pop %v1304
    %v1306 = vmul.f32 1.0, %v1305
    %v1307 = vxor.u32 %v1298, 2147483648
    %v1308 = vmul.f32 %v1307, 1.442695
    %v1309 = vpow.pop %v1308
    %v1310 = vadd.f32 %v1309, 1.0
    %v1311 = vrcp.pop %v1310
    %v1312 = vmul.f32 1.0, %v1311
    %v1313 = vtanh.pop %v1299
    %v1314 = vxor.u32 %v1300, 2147483648
    %v1315 = vmul.f32 %v1314, 1.442695
    %v1316 = vpow.pop %v1315
    %v1317 = vadd.f32 %v1316, 1.0
    %v1318 = vrcp.pop %v1317
    %v1319 = vmul.f32 1.0, %v1318
    %v1321 = vrot.slane %v1149, 6
    %v1323 = vmul.f32 %v1312, %v1321
    %v1324 = vmul.f32 %v1306, %v1313
    %v1325 = vadd.f32 %v1323, %v1324
    %v1326 = vtanh.pop %v1325
    %v1327 = vmul.f32 %v1319, %v1326
    %1328 = vmatprep.subr.mxu0 %v416
    %1329 = vmatpush1.msra.mxu0 %v415
    %1330 = vmatprep.subr.mxu0 %v412
    %1331 = vmatpush1.msra.mxu0 %v411
    %1332 = vmatprep.subr.mxu0 %v408
    %1333 = vmatpush1.msra.mxu0 %v407
    %1334 = vmatprep.subr.mxu0 %v404
    %1335 = vmatpush1.msra.mxu0 %v403
    %1336 = vmatprep.subr.mxu0 %v400
    %1337 = vmatpush1.msra.mxu0 %v399
    %1338 = vmatprep.subr.mxu0 %v396
    %1339 = vmatpush1.msra.mxu0 %v395
    %1340 = vmatprep.subr.mxu0 %v392
    %1341 = vmatpush1.msra.mxu0 %v391
    %1342 = vmatprep.subr.mxu0 %v388
    %1343 = vmatpush1.msra.mxu0 %v387
    %1344 = vmatprep.subr.mxu0 %v384
    %1345 = vmatpush1.msra.mxu0 %v383
    %1346 = vmatprep.subr.mxu0 %v380
    %1347 = vmatpush1.msra.mxu0 %v379
    %1348 = vmatprep.subr.mxu0 %v376
    %1349 = vmatpush1.msra.mxu0 %v375
    %1350 = vmatprep.subr.mxu0 %v372
    %1351 = vmatpush1.msra.mxu0 %v371
    %1352 = vmatprep.subr.mxu0 %v368
    %1353 = vmatpush1.msra.mxu0 %v367
    %1354 = vmatprep.subr.mxu0 %v364
    %1355 = vmatpush1.msra.mxu0 %v363
    %1356 = vmatprep.subr.mxu0 %v360
    %1357 = vmatpush1.msra.mxu0 %v359
    %1358 = vmatprep.subr.mxu0 %v356
    %1359 = vmatpush1.msra.mxu0 %v355
    %1360 = vmatprep.subr.mxu0 0.0
    %1361 = vmatpush2.msra.mxu0 0.0
    %1362 = vmatprep.subr.mxu0 0.0
    %1363 = vmatpush2.msra.mxu0 0.0
    %1364 = vmatprep.subr.mxu0 0.0
    %1365 = vmatpush2.msra.mxu0 0.0
    %1366 = vmatprep.subr.mxu0 0.0
    %1367 = vmatpush2.msra.mxu0 0.0
    %1368 = vmatprep.subr.mxu0 0.0
    %1369 = vmatpush2.msra.mxu0 0.0
    %1370 = vmatprep.subr.mxu0 0.0
    %1371 = vmatpush2.msra.mxu0 0.0
    %1372 = vmatprep.subr.mxu0 0.0
    %1373 = vmatpush2.msra.mxu0 0.0
    %1374 = vmatprep.subr.mxu0 0.0
    %1375 = vmatpush2.msra.mxu0 0.0
    %1376 = vmatprep.subr.mxu0 0.0
    %1377 = vmatpush2.msra.mxu0 0.0
    %1378 = vmatprep.subr.mxu0 0.0
    %1379 = vmatpush2.msra.mxu0 0.0
    %1380 = vmatprep.subr.mxu0 0.0
    %1381 = vmatpush2.msra.mxu0 0.0
    %1382 = vmatprep.subr.mxu0 0.0
    %1383 = vmatpush2.msra.mxu0 0.0
    %1384 = vmatprep.subr.mxu0 0.0
    %1385 = vmatpush2.msra.mxu0 0.0
    %1386 = vmatprep.subr.mxu0 0.0
    %1387 = vmatpush2.msra.mxu0 0.0
    %1388 = vmatprep.subr.mxu0 0.0
    %1389 = vmatpush2.msra.mxu0 0.0
    %1390 = vmatprep.subr.mxu0 0.0
    %1391 = vmatpush2.msra.mxu0 0.0
    %1392 = vmatprep.mubr.f32.mxu0 0.0
    %1393 = vmatmul.mubr.f32.gmra.mxu0 %v1327
    %v1394 = vpop.f32.mrf.mxu0
    %v1395 = vadd.f32 0.0, %v1394
    %v1396 = vpop.f32.mrf.mxu0
    %v1397 = vadd.f32 0.0, %v1396
    %1398 = vdwg.mxu0
    %1399 = vmatprep.subr.mxu0 %v418
    %1400 = vmatpush1.msra.mxu0 %v417
    %1401 = vmatprep.subr.mxu0 %v414
    %1402 = vmatpush1.msra.mxu0 %v413
    %1403 = vmatprep.subr.mxu0 %v410
    %1404 = vmatpush1.msra.mxu0 %v409
    %1405 = vmatprep.subr.mxu0 %v406
    %1406 = vmatpush1.msra.mxu0 %v405
    %1407 = vmatprep.subr.mxu0 %v402
    %1408 = vmatpush1.msra.mxu0 %v401
    %1409 = vmatprep.subr.mxu0 %v398
    %1410 = vmatpush1.msra.mxu0 %v397
    %1411 = vmatprep.subr.mxu0 %v394
    %1412 = vmatpush1.msra.mxu0 %v393
    %1413 = vmatprep.subr.mxu0 %v390
    %1414 = vmatpush1.msra.mxu0 %v389
    %1415 = vmatprep.subr.mxu0 %v386
    %1416 = vmatpush1.msra.mxu0 %v385
    %1417 = vmatprep.subr.mxu0 %v382
    %1418 = vmatpush1.msra.mxu0 %v381
    %1419 = vmatprep.subr.mxu0 %v378
    %1420 = vmatpush1.msra.mxu0 %v377
    %1421 = vmatprep.subr.mxu0 %v374
    %1422 = vmatpush1.msra.mxu0 %v373
    %1423 = vmatprep.subr.mxu0 %v370
    %1424 = vmatpush1.msra.mxu0 %v369
    %1425 = vmatprep.subr.mxu0 %v366
    %1426 = vmatpush1.msra.mxu0 %v365
    %1427 = vmatprep.subr.mxu0 %v362
    %1428 = vmatpush1.msra.mxu0 %v361
    %1429 = vmatprep.subr.mxu0 %v358
    %1430 = vmatpush1.msra.mxu0 %v357
    %1431 = vmatprep.subr.mxu0 0.0
    %1432 = vmatpush2.msra.mxu0 0.0
    %1433 = vmatprep.subr.mxu0 0.0
    %1434 = vmatpush2.msra.mxu0 0.0
    %1435 = vmatprep.subr.mxu0 0.0
    %1436 = vmatpush2.msra.mxu0 0.0
    %1437 = vmatprep.subr.mxu0 0.0
    %1438 = vmatpush2.msra.mxu0 0.0
    %1439 = vmatprep.subr.mxu0 0.0
    %1440 = vmatpush2.msra.mxu0 0.0
    %1441 = vmatprep.subr.mxu0 0.0
    %1442 = vmatpush2.msra.mxu0 0.0
    %1443 = vmatprep.subr.mxu0 0.0
    %1444 = vmatpush2.msra.mxu0 0.0
    %1445 = vmatprep.subr.mxu0 0.0
    %1446 = vmatpush2.msra.mxu0 0.0
    %1447 = vmatprep.subr.mxu0 0.0
    %1448 = vmatpush2.msra.mxu0 0.0
    %1449 = vmatprep.subr.mxu0 0.0
    %1450 = vmatpush2.msra.mxu0 0.0
    %1451 = vmatprep.subr.mxu0 0.0
    %1452 = vmatpush2.msra.mxu0 0.0
    %1453 = vmatprep.subr.mxu0 0.0
    %1454 = vmatpush2.msra.mxu0 0.0
    %1455 = vmatprep.subr.mxu0 0.0
    %1456 = vmatpush2.msra.mxu0 0.0
    %1457 = vmatprep.subr.mxu0 0.0
    %1458 = vmatpush2.msra.mxu0 0.0
    %1459 = vmatprep.subr.mxu0 0.0
    %1460 = vmatpush2.msra.mxu0 0.0
    %1461 = vmatprep.subr.mxu0 0.0
    %1462 = vmatpush2.msra.mxu0 0.0
    %1463 = vmatprep.mubr.f32.mxu0 0.0
    %1464 = vmatmul.mubr.f32.gmra.mxu0 %v1327
    %v1465 = vpop.f32.mrf.mxu0
    %v1466 = vadd.f32 0.0, %v1465
    %v1467 = vpop.f32.mrf.mxu0
    %v1468 = vadd.f32 0.0, %v1467
    %1469 = vdwg.mxu0
    %v1474 = vrot.slane %v1395, 6
    %v1475 = vrot.slane %v1397, 6
    %v1476 = vrot.slane %v1466, 6
    %v1477 = vrot.slane %v1468, 6
    %v1482 = vadd.f32 %v274, %v1474
    %v1483 = vadd.f32 %v276, %v1475
    %v1484 = vadd.f32 %v351, %v1476
    %v1485 = vadd.f32 %v353, %v1477
    %v1486 = vxor.u32 %v1482, 2147483648
    %v1487 = vmul.f32 %v1486, 1.442695
    %v1488 = vpow.pop %v1487
    %v1489 = vadd.f32 %v1488, 1.0
    %v1490 = vrcp.pop %v1489
    %v1491 = vmul.f32 1.0, %v1490
    %v1492 = vxor.u32 %v1483, 2147483648
    %v1493 = vmul.f32 %v1492, 1.442695
    %v1494 = vpow.pop %v1493
    %v1495 = vadd.f32 %v1494, 1.0
    %v1496 = vrcp.pop %v1495
    %v1497 = vmul.f32 1.0, %v1496
    %v1498 = vtanh.pop %v1484
    %v1499 = vxor.u32 %v1485, 2147483648
    %v1500 = vmul.f32 %v1499, 1.442695
    %v1501 = vpow.pop %v1500
    %v1502 = vadd.f32 %v1501, 1.0
    %v1503 = vrcp.pop %v1502
    %v1504 = vmul.f32 1.0, %v1503
    %v1506 = vrot.slane %v1325, 6
    %v1508 = vmul.f32 %v1497, %v1506
    %v1509 = vmul.f32 %v1491, %v1498
    %v1510 = vadd.f32 %v1508, %v1509
    %v1511 = vtanh.pop %v1510
    %v1512 = vmul.f32 %v1504, %v1511
    %v1514 = vrot.slane %v1512, 2
    %1516 = vmatprep.subr.mxu0 %v416
    %1517 = vmatpush1.msra.mxu0 %v415
    %1518 = vmatprep.subr.mxu0 %v412
    %1519 = vmatpush1.msra.mxu0 %v411
    %1520 = vmatprep.subr.mxu0 %v408
    %1521 = vmatpush1.msra.mxu0 %v407
    %1522 = vmatprep.subr.mxu0 %v404
    %1523 = vmatpush1.msra.mxu0 %v403
    %1524 = vmatprep.subr.mxu0 %v400
    %1525 = vmatpush1.msra.mxu0 %v399
    %1526 = vmatprep.subr.mxu0 %v396
    %1527 = vmatpush1.msra.mxu0 %v395
    %1528 = vmatprep.subr.mxu0 %v392
    %1529 = vmatpush1.msra.mxu0 %v391
    %1530 = vmatprep.subr.mxu0 %v388
    %1531 = vmatpush1.msra.mxu0 %v387
    %1532 = vmatprep.subr.mxu0 %v384
    %1533 = vmatpush1.msra.mxu0 %v383
    %1534 = vmatprep.subr.mxu0 %v380
    %1535 = vmatpush1.msra.mxu0 %v379
    %1536 = vmatprep.subr.mxu0 %v376
    %1537 = vmatpush1.msra.mxu0 %v375
    %1538 = vmatprep.subr.mxu0 %v372
    %1539 = vmatpush1.msra.mxu0 %v371
    %1540 = vmatprep.subr.mxu0 %v368
    %1541 = vmatpush1.msra.mxu0 %v367
    %1542 = vmatprep.subr.mxu0 %v364
    %1543 = vmatpush1.msra.mxu0 %v363
    %1544 = vmatprep.subr.mxu0 %v360
    %1545 = vmatpush1.msra.mxu0 %v359
    %1546 = vmatprep.subr.mxu0 %v356
    %1547 = vmatpush1.msra.mxu0 %v355
    %1548 = vmatprep.subr.mxu0 0.0
    %1549 = vmatpush2.msra.mxu0 0.0
    %1550 = vmatprep.subr.mxu0 0.0
    %1551 = vmatpush2.msra.mxu0 0.0
    %1552 = vmatprep.subr.mxu0 0.0
    %1553 = vmatpush2.msra.mxu0 0.0
    %1554 = vmatprep.subr.mxu0 0.0
    %1555 = vmatpush2.msra.mxu0 0.0
    %1556 = vmatprep.subr.mxu0 0.0
    %1557 = vmatpush2.msra.mxu0 0.0
    %1558 = vmatprep.subr.mxu0 0.0
    %1559 = vmatpush2.msra.mxu0 0.0
    %1560 = vmatprep.subr.mxu0 0.0
    %1561 = vmatpush2.msra.mxu0 0.0
    %1562 = vmatprep.subr.mxu0 0.0
    %1563 = vmatpush2.msra.mxu0 0.0
    %1564 = vmatprep.subr.mxu0 0.0
    %1565 = vmatpush2.msra.mxu0 0.0
    %1566 = vmatprep.subr.mxu0 0.0
    %1567 = vmatpush2.msra.mxu0 0.0
    %1568 = vmatprep.subr.mxu0 0.0
    %1569 = vmatpush2.msra.mxu0 0.0
    %1570 = vmatprep.subr.mxu0 0.0
    %1571 = vmatpush2.msra.mxu0 0.0
    %1572 = vmatprep.subr.mxu0 0.0
    %1573 = vmatpush2.msra.mxu0 0.0
    %1574 = vmatprep.subr.mxu0 0.0
    %1575 = vmatpush2.msra.mxu0 0.0
    %1576 = vmatprep.subr.mxu0 0.0
    %1577 = vmatpush2.msra.mxu0 0.0
    %1578 = vmatprep.subr.mxu0 0.0
    %1579 = vmatpush2.msra.mxu0 0.0
    %1580 = vmatprep.mubr.f32.mxu0 0.0
    %1581 = vmatmul.mubr.f32.gmra.mxu0 %v1514
    %v1582 = vpop.f32.mrf.mxu0
    %v1583 = vadd.f32 0.0, %v1582
    %v1584 = vpop.f32.mrf.mxu0
    %v1585 = vadd.f32 0.0, %v1584
    %1586 = vdwg.mxu0
    %1587 = vmatprep.subr.mxu0 %v418
    %1588 = vmatpush1.msra.mxu0 %v417
    %1589 = vmatprep.subr.mxu0 %v414
    %1590 = vmatpush1.msra.mxu0 %v413
    %1591 = vmatprep.subr.mxu0 %v410
    %1592 = vmatpush1.msra.mxu0 %v409
    %1593 = vmatprep.subr.mxu0 %v406
    %1594 = vmatpush1.msra.mxu0 %v405
    %1595 = vmatprep.subr.mxu0 %v402
    %1596 = vmatpush1.msra.mxu0 %v401
    %1597 = vmatprep.subr.mxu0 %v398
    %1598 = vmatpush1.msra.mxu0 %v397
    %1599 = vmatprep.subr.mxu0 %v394
    %1600 = vmatpush1.msra.mxu0 %v393
    %1601 = vmatprep.subr.mxu0 %v390
    %1602 = vmatpush1.msra.mxu0 %v389
    %1603 = vmatprep.subr.mxu0 %v386
    %1604 = vmatpush1.msra.mxu0 %v385
    %1605 = vmatprep.subr.mxu0 %v382
    %1606 = vmatpush1.msra.mxu0 %v381
    %1607 = vmatprep.subr.mxu0 %v378
    %1608 = vmatpush1.msra.mxu0 %v377
    %1609 = vmatprep.subr.mxu0 %v374
    %1610 = vmatpush1.msra.mxu0 %v373
    %1611 = vmatprep.subr.mxu0 %v370
    %1612 = vmatpush1.msra.mxu0 %v369
    %1613 = vmatprep.subr.mxu0 %v366
    %1614 = vmatpush1.msra.mxu0 %v365
    %1615 = vmatprep.subr.mxu0 %v362
    %1616 = vmatpush1.msra.mxu0 %v361
    %1617 = vmatprep.subr.mxu0 %v358
    %1618 = vmatpush1.msra.mxu0 %v357
    %1619 = vmatprep.subr.mxu0 0.0
    %1620 = vmatpush2.msra.mxu0 0.0
    %1621 = vmatprep.subr.mxu0 0.0
    %1622 = vmatpush2.msra.mxu0 0.0
    %1623 = vmatprep.subr.mxu0 0.0
    %1624 = vmatpush2.msra.mxu0 0.0
    %1625 = vmatprep.subr.mxu0 0.0
    %1626 = vmatpush2.msra.mxu0 0.0
    %1627 = vmatprep.subr.mxu0 0.0
    %1628 = vmatpush2.msra.mxu0 0.0
    %1629 = vmatprep.subr.mxu0 0.0
    %1630 = vmatpush2.msra.mxu0 0.0
    %1631 = vmatprep.subr.mxu0 0.0
    %1632 = vmatpush2.msra.mxu0 0.0
    %1633 = vmatprep.subr.mxu0 0.0
    %1634 = vmatpush2.msra.mxu0 0.0
    %1635 = vmatprep.subr.mxu0 0.0
    %1636 = vmatpush2.msra.mxu0 0.0
    %1637 = vmatprep.subr.mxu0 0.0
    %1638 = vmatpush2.msra.mxu0 0.0
    %1639 = vmatprep.subr.mxu0 0.0
    %1640 = vmatpush2.msra.mxu0 0.0
    %1641 = vmatprep.subr.mxu0 0.0
    %1642 = vmatpush2.msra.mxu0 0.0
    %1643 = vmatprep.subr.mxu0 0.0
    %1644 = vmatpush2.msra.mxu0 0.0
    %1645 = vmatprep.subr.mxu0 0.0
    %1646 = vmatpush2.msra.mxu0 0.0
    %1647 = vmatprep.subr.mxu0 0.0
    %1648 = vmatpush2.msra.mxu0 0.0
    %1649 = vmatprep.subr.mxu0 0.0
    %1650 = vmatpush2.msra.mxu0 0.0
    %1651 = vmatprep.mubr.f32.mxu0 0.0
    %1652 = vmatmul.mubr.f32.gmra.mxu0 %v1514
    %v1653 = vpop.f32.mrf.mxu0
    %v1654 = vadd.f32 0.0, %v1653
    %v1655 = vpop.f32.mrf.mxu0
    %v1656 = vadd.f32 0.0, %v1655
    %1657 = vdwg.mxu0
    %v1662 = vrot.slane %v1583, 4
    %v1663 = vrot.slane %v1585, 4
    %v1664 = vrot.slane %v1654, 4
    %v1665 = vrot.slane %v1656, 4
    %v1670 = vadd.f32 %v274, %v1662
    %v1671 = vadd.f32 %v276, %v1663
    %v1672 = vadd.f32 %v351, %v1664
    %v1673 = vadd.f32 %v353, %v1665
    %v1674 = vxor.u32 %v1670, 2147483648
    %v1675 = vmul.f32 %v1674, 1.442695
    %v1676 = vpow.pop %v1675
    %v1677 = vadd.f32 %v1676, 1.0
    %v1678 = vrcp.pop %v1677
    %v1679 = vmul.f32 1.0, %v1678
    %v1680 = vxor.u32 %v1671, 2147483648
    %v1681 = vmul.f32 %v1680, 1.442695
    %v1682 = vpow.pop %v1681
    %v1683 = vadd.f32 %v1682, 1.0
    %v1684 = vrcp.pop %v1683
    %v1685 = vmul.f32 1.0, %v1684
    %v1686 = vtanh.pop %v1672
    %v1687 = vxor.u32 %v1673, 2147483648
    %v1688 = vmul.f32 %v1687, 1.442695
    %v1689 = vpow.pop %v1688
    %v1690 = vadd.f32 %v1689, 1.0
    %v1691 = vrcp.pop %v1690
    %v1692 = vmul.f32 1.0, %v1691
    %v1694 = vrot.slane %v1510, 6
    %v1696 = vmul.f32 %v1685, %v1694
    %v1697 = vmul.f32 %v1679, %v1686
    %v1698 = vadd.f32 %v1696, %v1697
    %v1699 = vtanh.pop %v1698
    %v1700 = vmul.f32 %v1692, %v1699
    %v1702 = vrot.slane %v1700, 4
    %1704 = vmatprep.subr.mxu0 %v416
    %1705 = vmatpush1.msra.mxu0 %v415
    %1706 = vmatprep.subr.mxu0 %v412
    %1707 = vmatpush1.msra.mxu0 %v411
    %1708 = vmatprep.subr.mxu0 %v408
    %1709 = vmatpush1.msra.mxu0 %v407
    %1710 = vmatprep.subr.mxu0 %v404
    %1711 = vmatpush1.msra.mxu0 %v403
    %1712 = vmatprep.subr.mxu0 %v400
    %1713 = vmatpush1.msra.mxu0 %v399
    %1714 = vmatprep.subr.mxu0 %v396
    %1715 = vmatpush1.msra.mxu0 %v395
    %1716 = vmatprep.subr.mxu0 %v392
    %1717 = vmatpush1.msra.mxu0 %v391
    %1718 = vmatprep.subr.mxu0 %v388
    %1719 = vmatpush1.msra.mxu0 %v387
    %1720 = vmatprep.subr.mxu0 %v384
    %1721 = vmatpush1.msra.mxu0 %v383
    %1722 = vmatprep.subr.mxu0 %v380
    %1723 = vmatpush1.msra.mxu0 %v379
    %1724 = vmatprep.subr.mxu0 %v376
    %1725 = vmatpush1.msra.mxu0 %v375
    %1726 = vmatprep.subr.mxu0 %v372
    %1727 = vmatpush1.msra.mxu0 %v371
    %1728 = vmatprep.subr.mxu0 %v368
    %1729 = vmatpush1.msra.mxu0 %v367
    %1730 = vmatprep.subr.mxu0 %v364
    %1731 = vmatpush1.msra.mxu0 %v363
    %1732 = vmatprep.subr.mxu0 %v360
    %1733 = vmatpush1.msra.mxu0 %v359
    %1734 = vmatprep.subr.mxu0 %v356
    %1735 = vmatpush1.msra.mxu0 %v355
    %1736 = vmatprep.subr.mxu0 0.0
    %1737 = vmatpush2.msra.mxu0 0.0
    %1738 = vmatprep.subr.mxu0 0.0
    %1739 = vmatpush2.msra.mxu0 0.0
    %1740 = vmatprep.subr.mxu0 0.0
    %1741 = vmatpush2.msra.mxu0 0.0
    %1742 = vmatprep.subr.mxu0 0.0
    %1743 = vmatpush2.msra.mxu0 0.0
    %1744 = vmatprep.subr.mxu0 0.0
    %1745 = vmatpush2.msra.mxu0 0.0
    %1746 = vmatprep.subr.mxu0 0.0
    %1747 = vmatpush2.msra.mxu0 0.0
    %1748 = vmatprep.subr.mxu0 0.0
    %1749 = vmatpush2.msra.mxu0 0.0
    %1750 = vmatprep.subr.mxu0 0.0
    %1751 = vmatpush2.msra.mxu0 0.0
    %1752 = vmatprep.subr.mxu0 0.0
    %1753 = vmatpush2.msra.mxu0 0.0
    %1754 = vmatprep.subr.mxu0 0.0
    %1755 = vmatpush2.msra.mxu0 0.0
    %1756 = vmatprep.subr.mxu0 0.0
    %1757 = vmatpush2.msra.mxu0 0.0
    %1758 = vmatprep.subr.mxu0 0.0
    %1759 = vmatpush2.msra.mxu0 0.0
    %1760 = vmatprep.subr.mxu0 0.0
    %1761 = vmatpush2.msra.mxu0 0.0
    %1762 = vmatprep.subr.mxu0 0.0
    %1763 = vmatpush2.msra.mxu0 0.0
    %1764 = vmatprep.subr.mxu0 0.0
    %1765 = vmatpush2.msra.mxu0 0.0
    %1766 = vmatprep.subr.mxu0 0.0
    %1767 = vmatpush2.msra.mxu0 0.0
    %1768 = vmatprep.mubr.f32.mxu0 0.0
    %1769 = vmatmul.mubr.f32.gmra.mxu0 %v1702
    %v1770 = vpop.f32.mrf.mxu0
    %v1771 = vadd.f32 0.0, %v1770
    %v1772 = vpop.f32.mrf.mxu0
    %v1773 = vadd.f32 0.0, %v1772
    %1774 = vdwg.mxu0
    %1775 = vmatprep.subr.mxu0 %v418
    %1776 = vmatpush1.msra.mxu0 %v417
    %1777 = vmatprep.subr.mxu0 %v414
    %1778 = vmatpush1.msra.mxu0 %v413
    %1779 = vmatprep.subr.mxu0 %v410
    %1780 = vmatpush1.msra.mxu0 %v409
    %1781 = vmatprep.subr.mxu0 %v406
    %1782 = vmatpush1.msra.mxu0 %v405
    %1783 = vmatprep.subr.mxu0 %v402
    %1784 = vmatpush1.msra.mxu0 %v401
    %1785 = vmatprep.subr.mxu0 %v398
    %1786 = vmatpush1.msra.mxu0 %v397
    %1787 = vmatprep.subr.mxu0 %v394
    %1788 = vmatpush1.msra.mxu0 %v393
    %1789 = vmatprep.subr.mxu0 %v390
    %1790 = vmatpush1.msra.mxu0 %v389
    %1791 = vmatprep.subr.mxu0 %v386
    %1792 = vmatpush1.msra.mxu0 %v385
    %1793 = vmatprep.subr.mxu0 %v382
    %1794 = vmatpush1.msra.mxu0 %v381
    %1795 = vmatprep.subr.mxu0 %v378
    %1796 = vmatpush1.msra.mxu0 %v377
    %1797 = vmatprep.subr.mxu0 %v374
    %1798 = vmatpush1.msra.mxu0 %v373
    %1799 = vmatprep.subr.mxu0 %v370
    %1800 = vmatpush1.msra.mxu0 %v369
    %1801 = vmatprep.subr.mxu0 %v366
    %1802 = vmatpush1.msra.mxu0 %v365
    %1803 = vmatprep.subr.mxu0 %v362
    %1804 = vmatpush1.msra.mxu0 %v361
    %1805 = vmatprep.subr.mxu0 %v358
    %1806 = vmatpush1.msra.mxu0 %v357
    %1807 = vmatprep.subr.mxu0 0.0
    %1808 = vmatpush2.msra.mxu0 0.0
    %1809 = vmatprep.subr.mxu0 0.0
    %1810 = vmatpush2.msra.mxu0 0.0
    %1811 = vmatprep.subr.mxu0 0.0
    %1812 = vmatpush2.msra.mxu0 0.0
    %1813 = vmatprep.subr.mxu0 0.0
    %1814 = vmatpush2.msra.mxu0 0.0
    %1815 = vmatprep.subr.mxu0 0.0
    %1816 = vmatpush2.msra.mxu0 0.0
    %1817 = vmatprep.subr.mxu0 0.0
    %1818 = vmatpush2.msra.mxu0 0.0
    %1819 = vmatprep.subr.mxu0 0.0
    %1820 = vmatpush2.msra.mxu0 0.0
    %1821 = vmatprep.subr.mxu0 0.0
    %1822 = vmatpush2.msra.mxu0 0.0
    %1823 = vmatprep.subr.mxu0 0.0
    %1824 = vmatpush2.msra.mxu0 0.0
    %1825 = vmatprep.subr.mxu0 0.0
    %1826 = vmatpush2.msra.mxu0 0.0
    %1827 = vmatprep.subr.mxu0 0.0
    %1828 = vmatpush2.msra.mxu0 0.0
    %1829 = vmatprep.subr.mxu0 0.0
    %1830 = vmatpush2.msra.mxu0 0.0
    %1831 = vmatprep.subr.mxu0 0.0
    %1832 = vmatpush2.msra.mxu0 0.0
    %1833 = vmatprep.subr.mxu0 0.0
    %1834 = vmatpush2.msra.mxu0 0.0
    %1835 = vmatprep.subr.mxu0 0.0
    %1836 = vmatpush2.msra.mxu0 0.0
    %1837 = vmatprep.subr.mxu0 0.0
    %1838 = vmatpush2.msra.mxu0 0.0
    %1839 = vmatprep.mubr.f32.mxu0 0.0
    %1840 = vmatmul.mubr.f32.gmra.mxu0 %v1702
    %v1841 = vpop.f32.mrf.mxu0
    %v1842 = vadd.f32 0.0, %v1841
    %v1843 = vpop.f32.mrf.mxu0
    %v1844 = vadd.f32 0.0, %v1843
    %1845 = vdwg.mxu0
    %v1850 = vrot.slane %v1771, 2
    %v1851 = vrot.slane %v1773, 2
    %v1852 = vrot.slane %v1842, 2
    %v1853 = vrot.slane %v1844, 2
    %v1858 = vadd.f32 %v274, %v1850
    %v1859 = vadd.f32 %v276, %v1851
    %v1860 = vadd.f32 %v351, %v1852
    %v1861 = vadd.f32 %v353, %v1853
    %v1862 = vxor.u32 %v1858, 2147483648
    %v1863 = vmul.f32 %v1862, 1.442695
    %v1864 = vpow.pop %v1863
    %v1865 = vadd.f32 %v1864, 1.0
    %v1866 = vrcp.pop %v1865
    %v1867 = vmul.f32 1.0, %v1866
    %v1868 = vxor.u32 %v1859, 2147483648
    %v1869 = vmul.f32 %v1868, 1.442695
    %v1870 = vpow.pop %v1869
    %v1871 = vadd.f32 %v1870, 1.0
    %v1872 = vrcp.pop %v1871
    %v1873 = vmul.f32 1.0, %v1872
    %v1874 = vtanh.pop %v1860
    %v1875 = vxor.u32 %v1861, 2147483648
    %v1876 = vmul.f32 %v1875, 1.442695
    %v1877 = vpow.pop %v1876
    %v1878 = vadd.f32 %v1877, 1.0
    %v1879 = vrcp.pop %v1878
    %v1880 = vmul.f32 1.0, %v1879
    %v1882 = vrot.slane %v1698, 6
    %v1884 = vmul.f32 %v1873, %v1882
    %v1885 = vmul.f32 %v1867, %v1874
    %v1886 = vadd.f32 %v1884, %v1885
    %v1887 = vtanh.pop %v1886
    %v1888 = vmul.f32 %v1880, %v1887
    %v1891 = vunpack.c.l.s4 1966171168
    %v1892 = vunpack.c.0.s8 %v1891
    %v1893 = vlaneseq
    %v1894 = vshrl.u32 %v1893, 7
    %v1895 = vsub.s32 %v1892, %v1894
    %v1896 = vrot.slane %v590, %v1895
    %v1897 = vcombine.high %v1896, %v1896
    %v1899 = vunpack.c.l.s4 1966171168
    %v1900 = vunpack.c.0.s8 %v1899
    %v1901 = vlaneseq
    %v1902 = vshrl.u32 %v1901, 7
    %v1903 = vsub.s32 %v1900, %v1902
    %v1904 = vrot.slane %v1896, %v1903
    %v1906 = vunpack.c.l.s4 1966171168
    %v1907 = vunpack.c.0.s8 %v1906
    %v1908 = vlaneseq
    %v1909 = vshrl.u32 %v1908, 7
    %v1910 = vsub.s32 %v1907, %v1909
    %v1911 = vrot.slane %v1897, %v1910
    %v1915 = vunpack.c.l.s4 1966171168
    %v1916 = vunpack.c.0.s8 %v1915
    %v1917 = vlaneseq
    %v1918 = vshrl.u32 %v1917, 7
    %v1919 = vsub.s32 %v1916, %v1918
    %v1920 = vrot.slane %v775, %v1919
    %v1921 = vcombine.high %v1920, %v1920
    %v1923 = vunpack.c.l.s4 1966171168
    %v1924 = vunpack.c.0.s8 %v1923
    %v1925 = vlaneseq
    %v1926 = vshrl.u32 %v1925, 7
    %v1927 = vsub.s32 %v1924, %v1926
    %v1928 = vrot.slane %v1920, %v1927
    %v1930 = vunpack.c.l.s4 1966171168
    %v1931 = vunpack.c.0.s8 %v1930
    %v1932 = vlaneseq
    %v1933 = vshrl.u32 %v1932, 7
    %v1934 = vsub.s32 %v1931, %v1933
    %v1935 = vrot.slane %v1921, %v1934
    %v1936 = vcombine.high %v1928, %v1928
    %v1937 = vcombine.high %v1935, %v1935
    %v1938 = vcombine.high %v963, %v963
    %v1940 = vunpack.c.l.s4 1966171168
    %v1941 = vunpack.c.0.s8 %v1940
    %v1942 = vlaneseq
    %v1943 = vshrl.u32 %v1942, 7
    %v1944 = vsub.s32 %v1941, %v1943
    %v1945 = vrot.slane %v1938, %v1944
    %v1946 = vcombine.high %v1945, %v1945
    %v1948 = vunpack.c.l.s4 1966171168
    %v1949 = vunpack.c.0.s8 %v1948
    %v1950 = vlaneseq
    %v1951 = vshrl.u32 %v1950, 7
    %v1952 = vsub.s32 %v1949, %v1951
    %v1953 = vrot.slane %v1945, %v1952
    %v1955 = vunpack.c.l.s4 1966171168
    %v1956 = vunpack.c.0.s8 %v1955
    %v1957 = vlaneseq
    %v1958 = vshrl.u32 %v1957, 7
    %v1959 = vsub.s32 %v1956, %v1958
    %v1960 = vrot.slane %v1946, %v1959
    %v1961 = vcombine.high %v1151, %v1151
    %v1963 = vunpack.c.l.s4 1966171168
    %v1964 = vunpack.c.0.s8 %v1963
    %v1965 = vlaneseq
    %v1966 = vshrl.u32 %v1965, 7
    %v1967 = vsub.s32 %v1964, %v1966
    %v1968 = vrot.slane %v1961, %v1967
    %v1969 = vcombine.high %v1968, %v1968
    %v1971 = vunpack.c.l.s4 1966171168
    %v1972 = vunpack.c.0.s8 %v1971
    %v1973 = vlaneseq
    %v1974 = vshrl.u32 %v1973, 7
    %v1975 = vsub.s32 %v1972, %v1974
    %v1976 = vrot.slane %v1968, %v1975
    %v1978 = vunpack.c.l.s4 1966171168
    %v1979 = vunpack.c.0.s8 %v1978
    %v1980 = vlaneseq
    %v1981 = vshrl.u32 %v1980, 7
    %v1982 = vsub.s32 %v1979, %v1981
    %v1983 = vrot.slane %v1969, %v1982
    %v1984 = vcombine.high %v1976, %v1976
    %v1985 = vcombine.high %v1983, %v1983
    %v1988 = vunpack.c.l.s4 1966171168
    %v1989 = vunpack.c.0.s8 %v1988
    %v1990 = vlaneseq
    %v1991 = vshrl.u32 %v1990, 7
    %v1992 = vsub.s32 %v1989, %v1991
    %v1993 = vrot.slane %v1327, %v1992
    %v1994 = vcombine.high %v1993, %v1993
    %v1996 = vunpack.c.l.s4 1966171168
    %v1997 = vunpack.c.0.s8 %v1996
    %v1998 = vlaneseq
    %v1999 = vshrl.u32 %v1998, 7
    %v2000 = vsub.s32 %v1997, %v1999
    %v2001 = vrot.slane %v1993, %v2000
    %v2003 = vunpack.c.l.s4 1966171168
    %v2004 = vunpack.c.0.s8 %v2003
    %v2005 = vlaneseq
    %v2006 = vshrl.u32 %v2005, 7
    %v2007 = vsub.s32 %v2004, %v2006
    %v2008 = vrot.slane %v1994, %v2007
    %v2010 = vunpack.c.l.s4 1966171168
    %v2011 = vunpack.c.0.s8 %v2010
    %v2012 = vlaneseq
    %v2013 = vshrl.u32 %v2012, 7
    %v2014 = vsub.s32 %v2011, %v2013
    %v2015 = vrot.slane %v1512, %v2014
    %v2016 = vcombine.high %v2015, %v2015
    %v2018 = vunpack.c.l.s4 1966171168
    %v2019 = vunpack.c.0.s8 %v2018
    %v2020 = vlaneseq
    %v2021 = vshrl.u32 %v2020, 7
    %v2022 = vsub.s32 %v2019, %v2021
    %v2023 = vrot.slane %v2015, %v2022
    %v2025 = vunpack.c.l.s4 1966171168
    %v2026 = vunpack.c.0.s8 %v2025
    %v2027 = vlaneseq
    %v2028 = vshrl.u32 %v2027, 7
    %v2029 = vsub.s32 %v2026, %v2028
    %v2030 = vrot.slane %v2016, %v2029
    %v2031 = vcombine.high %v2023, %v2023
    %v2032 = vcombine.high %v2030, %v2030
    %v2033 = vcombine.high %v1700, %v1700
    %v2035 = vunpack.c.l.s4 1966171168
    %v2036 = vunpack.c.0.s8 %v2035
    %v2037 = vlaneseq
    %v2038 = vshrl.u32 %v2037, 7
    %v2039 = vsub.s32 %v2036, %v2038
    %v2040 = vrot.slane %v2033, %v2039
    %v2041 = vcombine.high %v2040, %v2040
    %v2043 = vunpack.c.l.s4 1966171168
    %v2044 = vunpack.c.0.s8 %v2043
    %v2045 = vlaneseq
    %v2046 = vshrl.u32 %v2045, 7
    %v2047 = vsub.s32 %v2044, %v2046
    %v2048 = vrot.slane %v2040, %v2047
    %v2050 = vunpack.c.l.s4 1966171168
    %v2051 = vunpack.c.0.s8 %v2050
    %v2052 = vlaneseq
    %v2053 = vshrl.u32 %v2052, 7
    %v2054 = vsub.s32 %v2051, %v2053
    %v2055 = vrot.slane %v2041, %v2054
    %v2057 = vcombine.high %v1888, %v1888
    %v2059 = vunpack.c.l.s4 1966171168
    %v2060 = vunpack.c.0.s8 %v2059
    %v2061 = vlaneseq
    %v2062 = vshrl.u32 %v2061, 7
    %v2063 = vsub.s32 %v2060, %v2062
    %v2064 = vrot.slane %v2057, %v2063
    %v2065 = vcombine.high %v2064, %v2064
    %v2067 = vunpack.c.l.s4 1966171168
    %v2068 = vunpack.c.0.s8 %v2067
    %v2069 = vlaneseq
    %v2070 = vshrl.u32 %v2069, 7
    %v2071 = vsub.s32 %v2068, %v2070
    %v2072 = vrot.slane %v2064, %v2071
    %v2074 = vunpack.c.l.s4 1966171168
    %v2075 = vunpack.c.0.s8 %v2074
    %v2076 = vlaneseq
    %v2077 = vshrl.u32 %v2076, 7
    %v2078 = vsub.s32 %v2075, %v2077
    %v2079 = vrot.slane %v2065, %v2078
    %v2080 = vcombine.high %v2072, %v2072
    %v2081 = vcombine.high %v2079, %v2079
    %v2082 = vlaneseq
    %v2083 = vshrl.u32 %v2082, 7
    %v2084 = vsub.s32 0, %v2083
    %v2085 = vrot.slane %v1936, %v2084
    %v2086 = vlaneseq
    %v2087 = vshrl.u32 %v2086, 7
    %v2088 = vsub.s32 0, %v2087
    %v2089 = vrot.slane %v1937, %v2088
    %v2092 = vlaneseq
    %v2093 = vshrl.u32 %v2092, 7
    %v2094 = vsub.s32 0, %v2093
    %v2095 = vrot.slane %v1953, %v2094
    %v2096 = vlaneseq
    %v2097 = vshrl.u32 %v2096, 7
    %v2098 = vsub.s32 0, %v2097
    %v2099 = vrot.slane %v1960, %v2098
    %v2102 = vlaneseq
    %v2103 = vshrl.u32 %v2102, 7
    %v2104 = vsub.s32 0, %v2103
    %v2105 = vrot.slane %v1984, %v2104
    %v2106 = vlaneseq
    %v2107 = vshrl.u32 %v2106, 7
    %v2108 = vsub.s32 0, %v2107
    %v2109 = vrot.slane %v1985, %v2108
    %v2112 = vlaneseq
    %v2113 = vshrl.u32 %v2112, 7
    %v2114 = vsub.s32 0, %v2113
    %v2115 = vrot.slane %v2001, %v2114
    %v2116 = vlaneseq
    %v2117 = vshrl.u32 %v2116, 7
    %v2118 = vsub.s32 0, %v2117
    %v2119 = vrot.slane %v2008, %v2118
    %v2122 = vlaneseq
    %v2123 = vshrl.u32 %v2122, 7
    %v2124 = vsub.s32 0, %v2123
    %v2125 = vrot.slane %v2031, %v2124
    %v2126 = vlaneseq
    %v2127 = vshrl.u32 %v2126, 7
    %v2128 = vsub.s32 0, %v2127
    %v2129 = vrot.slane %v2032, %v2128
    %v2132 = vlaneseq
    %v2133 = vshrl.u32 %v2132, 7
    %v2134 = vsub.s32 0, %v2133
    %v2135 = vrot.slane %v2048, %v2134
    %v2136 = vlaneseq
    %v2137 = vshrl.u32 %v2136, 7
    %v2138 = vsub.s32 0, %v2137
    %v2139 = vrot.slane %v2055, %v2138
    %v2142 = vlaneseq
    %v2143 = vshrl.u32 %v2142, 7
    %v2144 = vsub.s32 0, %v2143
    %v2145 = vrot.slane %v2080, %v2144
    %v2146 = vlaneseq
    %v2147 = vshrl.u32 %v2146, 7
    %v2148 = vsub.s32 0, %v2147
    %v2149 = vrot.slane %v2081, %v2148
    %vm2152 = vcmask 1040384
    %v2153 = vsel %vm2152, %v1904, %v2085
    %v2154 = vsel %vm2152, %v1911, %v2089
    %v2155 = vsel %vm77, %v2153, %v2095
    %v2156 = vsel %vm77, %v2154, %v2099
    %vm2157 = vcmask 1042432
    %v2158 = vsel %vm2157, %v2155, %v2105
    %v2159 = vsel %vm2157, %v2156, %v2109
    %vm2160 = vcmask 1043456
    %v2161 = vsel %vm2160, %v2158, %v2115
    %v2162 = vsel %vm2160, %v2159, %v2119
    %vm2163 = vcmask 1044480
    %v2164 = vsel %vm2163, %v2161, %v2125
    %v2165 = vsel %vm2163, %v2162, %v2129
    %vm2166 = vcmask 1045504
    %v2167 = vsel %vm2166, %v2164, %v2135
    %v2168 = vsel %vm2166, %v2165, %v2139
    %vm2169 = vcmask 1046528
    %v2170 = vsel %vm2169, %v2167, %v2145
    %v2171 = vsel %vm2169, %v2168, %v2149
    %v2172 = vld [vmem:[%s5] sm:$0xff]
    %v2173 = vld [vmem:[%s5 + $0x8] sm:$0xff]
    %v2174 = vld [vmem:[%s5 + $0x10] sm:$0xff]
    %v2175 = vld [vmem:[%s5 + $0x18] sm:$0xff]
    %v2176 = vld [vmem:[%s5 + $0x20] sm:$0xff]
    %v2177 = vld [vmem:[%s5 + $0x28] sm:$0xff]
    %v2178 = vld [vmem:[%s5 + $0x30] sm:$0xff]
    %v2179 = vld [vmem:[%s5 + $0x38] sm:$0xff]
    %v2180 = vld [vmem:[%s5 + $0x40] sm:$0xff]
    %v2181 = vld [vmem:[%s5 + $0x48] sm:$0xff]
    %v2182 = vld [vmem:[%s5 + $0x50] sm:$0xff]
    %v2183 = vld [vmem:[%s5 + $0x58] sm:$0xff]
    %v2184 = vld [vmem:[%s5 + $0x60] sm:$0xff]
    %v2185 = vld [vmem:[%s5 + $0x68] sm:$0xff]
    %v2186 = vld [vmem:[%s5 + $0x70] sm:$0xff]
    %v2187 = vld [vmem:[%s5 + $0x78] sm:$0xff]
    %v2188 = vld [vmem:[%s6] sm:$0x1]
    %v2190 = vlaneseq
    %v2191 = vshrl.u32 %v2190, 7
    %v2192 = vsub.s32 0, %v2191
    %v2193 = vrot.slane %v2188, %v2192
    %2195 = vmatprep.subr.mxu0 0.0
    %2196 = vmatpush1.msra.mxu0 %v2187
    %2197 = vmatprep.subr.mxu0 0.0
    %2198 = vmatpush1.msra.mxu0 %v2186
    %2199 = vmatprep.subr.mxu0 0.0
    %2200 = vmatpush1.msra.mxu0 %v2185
    %2201 = vmatprep.subr.mxu0 0.0
    %2202 = vmatpush1.msra.mxu0 %v2184
    %2203 = vmatprep.subr.mxu0 0.0
    %2204 = vmatpush1.msra.mxu0 %v2183
    %2205 = vmatprep.subr.mxu0 0.0
    %2206 = vmatpush1.msra.mxu0 %v2182
    %2207 = vmatprep.subr.mxu0 0.0
    %2208 = vmatpush1.msra.mxu0 %v2181
    %2209 = vmatprep.subr.mxu0 0.0
    %2210 = vmatpush1.msra.mxu0 %v2180
    %2211 = vmatprep.subr.mxu0 0.0
    %2212 = vmatpush1.msra.mxu0 %v2179
    %2213 = vmatprep.subr.mxu0 0.0
    %2214 = vmatpush1.msra.mxu0 %v2178
    %2215 = vmatprep.subr.mxu0 0.0
    %2216 = vmatpush1.msra.mxu0 %v2177
    %2217 = vmatprep.subr.mxu0 0.0
    %2218 = vmatpush1.msra.mxu0 %v2176
    %2219 = vmatprep.subr.mxu0 0.0
    %2220 = vmatpush1.msra.mxu0 %v2175
    %2221 = vmatprep.subr.mxu0 0.0
    %2222 = vmatpush1.msra.mxu0 %v2174
    %2223 = vmatprep.subr.mxu0 0.0
    %2224 = vmatpush1.msra.mxu0 %v2173
    %2225 = vmatprep.subr.mxu0 0.0
    %2226 = vmatpush1.msra.mxu0 %v2172
    %2227 = vmatprep.subr.mxu0 0.0
    %2228 = vmatpush2.msra.mxu0 0.0
    %2229 = vmatprep.subr.mxu0 0.0
    %2230 = vmatpush2.msra.mxu0 0.0
    %2231 = vmatprep.subr.mxu0 0.0
    %2232 = vmatpush2.msra.mxu0 0.0
    %2233 = vmatprep.subr.mxu0 0.0
    %2234 = vmatpush2.msra.mxu0 0.0
    %2235 = vmatprep.subr.mxu0 0.0
    %2236 = vmatpush2.msra.mxu0 0.0
    %2237 = vmatprep.subr.mxu0 0.0
    %2238 = vmatpush2.msra.mxu0 0.0
    %2239 = vmatprep.subr.mxu0 0.0
    %2240 = vmatpush2.msra.mxu0 0.0
    %2241 = vmatprep.subr.mxu0 0.0
    %2242 = vmatpush2.msra.mxu0 0.0
    %2243 = vmatprep.subr.mxu0 0.0
    %2244 = vmatpush2.msra.mxu0 0.0
    %2245 = vmatprep.subr.mxu0 0.0
    %2246 = vmatpush2.msra.mxu0 0.0
    %2247 = vmatprep.subr.mxu0 0.0
    %2248 = vmatpush2.msra.mxu0 0.0
    %2249 = vmatprep.subr.mxu0 0.0
    %2250 = vmatpush2.msra.mxu0 0.0
    %2251 = vmatprep.subr.mxu0 0.0
    %2252 = vmatpush2.msra.mxu0 0.0
    %2253 = vmatprep.subr.mxu0 0.0
    %2254 = vmatpush2.msra.mxu0 0.0
    %2255 = vmatprep.subr.mxu0 0.0
    %2256 = vmatpush2.msra.mxu0 0.0
    %2257 = vmatprep.subr.mxu0 0.0
    %2258 = vmatpush2.msra.mxu0 0.0
    %2259 = vmatprep.mubr.f32.mxu0 0.0
    %2260 = vmatmul.mubr.f32.gmra.mxu0 %v2170
    %v2261 = vpop.f32.mrf.mxu0
    %v2262 = vadd.f32 %v2193, %v2261
    %v2263 = vpop.f32.mrf.mxu0
    %2264 = vmatprep.mubr.f32.mxu0 0.0
    %2265 = vmatmul.mubr.f32.gmra.mxu0 %v2171
    %v2266 = vpop.f32.mrf.mxu0
    %v2267 = vadd.f32 %v2193, %v2266
    %v2268 = vpop.f32.mrf.mxu0
    %2269 = vdwg.mxu0
    %2270 = vst.msk [vmem:[#allocation5] sm:$0xff] %vm70, %v2262
    %2271 = vst.msk [vmem:[#allocation5 + $0x8] sm:$0xff] %vm70, %v2267
    // Predicated region
    $region42: #{tpu_custom_call.1} parent=1 // pred_check
      _
    $region43: #{tpu_custom_call.1} parent=1 // pred_check_branch
      %2273 = sbr.rel (0) target = $region45
    $region44: #{tpu_custom_call.1} parent=1 // pred_region
      %s2275 = ssub.s32 256, 256
      %2276 = vsyncadd [#allocation4], %s2275
      %s2277 = sshll.u32 [#allocation5], 4
      %s2278 = int_to_ptr.vmem [resolvable:$true] %s2277
      %2283 = dma.vmem_to_hbm [thread:$0]  %s2278, 256, %s9, [#allocation4], 128, 128, 8
    $region45: #{tpu_custom_call.1} parent=1 // pred_fallthru
      _
    // Predicated region
    $region46: #{tpu_custom_call.1} parent=1 // pred_check
      _
    $region47: #{tpu_custom_call.1} parent=1 // pred_check_branch
      %2285 = sbr.rel (0) target = $region49
    $region48: #{tpu_custom_call.1} parent=1 // pred_region
      %2286 = dma.done [#allocation4], 256
    $region49: #{tpu_custom_call.1} parent=1 // pred_fallthru
      _
    %2287 = vsyncpa [#allocation3], 1
    %2288 = vsyncpa [#allocation4], 1

</llo_original>
